<compile_context>
chip_gen: v5e
topology: v5e:2x2
jax: 0.10.0
libtpu: 0.0.40
codegen_flags: <defaults>
</compile_context>

<pallas_src>
import functools
import math

import numpy as np

import jax
import jax.numpy as jnp
from jax.experimental import pallas as pl
from jax.experimental.pallas import tpu as pltpu

MIN_NORM = 1e-15
EPS_F32 = 1e-7          # clamp for arcosh argument (HGCN: eps[float32])
CLAMP_HYP = 15.0        # clamp for sinh/cosh argument (HGCN cosh/sinh clamp)


def _round_up(a: int, b: int) -> int:
    return ((a + b - 1) // b) * b


def hypact_kernel(s_ref, x_ref, o_ref, *, c_in: float, c_out: float,
                  d: int, g: int):
    x = x_ref[...].astype(jnp.float32)          # (tm, G*D)

    # Lane index within the packed row; time coordinate sits at lane k*D.
    col = jax.lax.broadcasted_iota(jnp.int32, x.shape, dimension=1)
    if g > 1:
        # 128 % d == 0  =>  d is a power of two, so use a cheap bitwise AND.
        is_time = (col & (d - 1)) == 0
    else:
        is_time = col == 0

    def seg_sum_bcast(z):
        # Sum z over each point's D lanes and broadcast the result back over
        # those lanes. Uses the (otherwise idle) MXU via a constant
        # block-diagonal ones matrix; exact f32 accumulation (HIGHEST).
        if g > 1:
            return jnp.dot(z, s_ref[...],
                           preferred_element_type=jnp.float32,
                           precision=jax.lax.Precision.HIGHEST)
        return jnp.sum(z, axis=-1, keepdims=True)

    y = jnp.where(is_time, 0.0, x)              # spatial part x[:, 1:]
    xt = jnp.where(is_time, x, 0.0)             # time part    x[:, 0:1]

    x0 = seg_sum_bcast(xt)                      # time coord, per-point bcast
    y2 = seg_sum_bcast(y * y)                   # ||spatial||^2, per-point bcast

    # ---------------- logmap0 (manifold_in, curvature c_in) ----------------
    k_in = 1.0 / c_in
    sqrt_k_in = math.sqrt(k_in)
    theta = jnp.maximum(x0 * (1.0 / sqrt_k_in), 1.0 + EPS_F32)
    arc = jnp.log(theta + jnp.sqrt(jnp.maximum(theta * theta - 1.0, 0.0)))
    inv_ynorm = jax.lax.rsqrt(jnp.maximum(y2, MIN_NORM * MIN_NORM))
    u = (sqrt_k_in * arc * inv_ynorm) * y       # single coef multiply

    # ------------- activation (ReLU) + proj_tan0 (implicit) ---------------
    # Time lanes of y are zero, so the time lanes of u are zero and ReLU
    # preserves them: proj_tan0 needs no extra select.
    u = jnp.maximum(u, 0.0)

    # ---------------- expmap0 (manifold_out, curvature c_out) --------------
    k_out = 1.0 / c_out
    sqrt_k_out = math.sqrt(k_out)
    v2 = jnp.maximum(seg_sum_bcast(u * u), MIN_NORM * MIN_NORM)
    v_norm = jnp.sqrt(v2)
    inv_vnorm = jax.lax.rsqrt(v2)
    theta2 = jnp.minimum(v_norm * (1.0 / sqrt_k_out), CLAMP_HYP)  # >= 0
    e = jnp.exp(theta2)                         # one exp feeds sinh and cosh
    ei = 1.0 / e
    sinh_t = 0.5 * (e - ei)
    cosh_t = 0.5 * (e + ei)

    out = jnp.where(is_time,
                    sqrt_k_out * cosh_t,                    # res[:, 0:1]
                    (sqrt_k_out * sinh_t * inv_vnorm) * u)  # res[:, 1:]
    o_ref[...] = out.astype(o_ref.dtype)


def hyp_act(x, *, c_in: float = 1.0, c_out: float = 1.0, tm: int | None = None):
    n, d = x.shape
    out_dtype = x.dtype

    # Pack G consecutive points per 128-lane row when D divides 128.
    g = 128 // d if (d < 128 and 128 % d == 0) else 1
    gd = g * d

    np_needed = pl.cdiv(n, g)                   # packed rows needed
    if tm is None:
        tm = 512                                # ~85% of HBM roofline tiles
    tm = max(8, min(tm, _round_up(np_needed, 8)))
    tm = _round_up(tm, 8)
    grid = pl.cdiv(np_needed, tm)
    np_rows = grid * tm
    n_pad = np_rows * g

    if n_pad != n:
        x = jnp.pad(x, ((0, n_pad - n), (0, 0)))   # zero rows are safe
    xp = x.reshape(np_rows, gd)                    # pure reshape, no transpose

    if g > 1:
        seg = np.repeat(np.arange(g), d)
        s_mat = jnp.asarray((seg[:, None] == seg[None, :]).astype(np.float32))
        s_spec = pl.BlockSpec((gd, gd), lambda i: (0, 0))
    else:
        s_mat = jnp.zeros((8, 128), jnp.float32)   # unused dummy
        s_spec = pl.BlockSpec((8, 128), lambda i: (0, 0))

    kernel = functools.partial(hypact_kernel, c_in=float(c_in),
                               c_out=float(c_out), d=d, g=g)

    out = pl.pallas_call(
        kernel,
        out_shape=jax.ShapeDtypeStruct((np_rows, gd), out_dtype),
        grid_spec=pltpu.PrefetchScalarGridSpec(
            num_scalar_prefetch=0,
            grid=(grid,),
            in_specs=[s_spec,
                      pl.BlockSpec((tm, gd), lambda i: (i, 0))],
            out_specs=pl.BlockSpec((tm, gd), lambda i: (i, 0)),
        ),
        compiler_params=pltpu.CompilerParams(
            dimension_semantics=("parallel",)),
    )(s_mat, xp)

    return out.reshape(n_pad, d)[:n]


# -------- plain-JAX reference (for constructing valid manifold points) --------
def expmap0_ref(u, c):
    K = 1.0 / c
    sqrtK = math.sqrt(K)
    v = u[:, 1:]
    v_norm = jnp.maximum(jnp.linalg.norm(v, axis=-1, keepdims=True), MIN_NORM)
    theta = v_norm / sqrtK
    time = sqrtK * jnp.cosh(theta)
    spatial = sqrtK * jnp.sinh(theta) * v / v_norm
    return jnp.concatenate([time, spatial], axis=-1)


def logmap0_ref(x, c):
    K = 1.0 / c
    sqrtK = math.sqrt(K)
    y = x[:, 1:]
    y_norm = jnp.maximum(jnp.linalg.norm(y, axis=-1, keepdims=True), MIN_NORM)
    theta = jnp.maximum(x[:, 0:1] / sqrtK, 1.0 + EPS_F32)
    spatial = sqrtK * jnp.arccosh(theta) * y / y_norm
    return jnp.concatenate([jnp.zeros_like(theta), spatial], axis=-1)


def hyp_act_ref(x, c_in, c_out):
    u = jnp.maximum(logmap0_ref(x, c_in), 0.0)       # act = ReLU
    u = u.at[:, 0:1].set(0.0)                        # proj_tan0 (Lorentz)
    return expmap0_ref(u, c_out)


if __name__ == "__main__":
    key = jax.random.PRNGKey(0)
    D = 32                   # ambient feature dim (d = 31)
    c_in, c_out = 1.0, 2.0   # deterministic curvatures of the two manifolds

    # Case 1: N divisible by the packing factor.
    N1 = 128
    t1 = 0.1 * jax.random.normal(key, (N1, D), dtype=jnp.float32)
    t1 = t1.at[:, 0].set(0.0)
    x1 = expmap0_ref(t1, c_in)
    out1 = jax.block_until_ready(hyp_act(x1, c_in=c_in, c_out=c_out))
    ref1 = hyp_act_ref(x1, c_in, c_out)
    assert out1.shape == (N1, D)
    assert jnp.max(jnp.abs(out1 - ref1)) < 1e-4, "mismatch vs reference (N=128)"

    # Case 2: ragged N exercising the cdiv + pad path.
    N2 = 100
    t2 = 0.1 * jax.random.normal(jax.random.PRNGKey(1), (N2, D),
                                 dtype=jnp.float32)
    t2 = t2.at[:, 0].set(0.0)
    x2 = expmap0_ref(t2, c_in)
    out2 = jax.block_until_ready(hyp_act(x2, c_in=c_in, c_out=c_out))
    ref2 = hyp_act_ref(x2, c_in, c_out)
    assert out2.shape == (N2, D)
    assert jnp.max(jnp.abs(out2 - ref2)) < 1e-4, "mismatch vs reference (N=100)"

    print("KERNEL_OK")
</pallas_src>

<mosaic_0001>
module attributes {stable_mosaic.version = 11 : i64} {
  func.func @hypact_kernel(%arg0: i32, %arg1: memref<128x128xf32, #tpu.memory_space<vmem>>, %arg2: memref<32x128xf32, #tpu.memory_space<vmem>>, %arg3: memref<32x128xf32, #tpu.memory_space<vmem>>) attributes {dimension_semantics = [#tpu.dimension_semantics<parallel>], iteration_bounds = array<i64: 1>, scalar_prefetch = 0 : i64, scratch_operands = 0 : i64, tpu.core_type = #tpu.core_type<tc>, window_params = [{pipeline_mode = #tpu.pipeline_mode<synchronous>, transform_indices = @transform_0, window_bounds = array<i64: 128, 128>}, {transform_indices = @transform_1, window_bounds = array<i64: 32, 128>}, {transform_indices = @transform_2, window_bounds = array<i64: 32, 128>}]} {
    %c0 = arith.constant 0 : index
    %c0_0 = arith.constant 0 : index
    %0 = vector.load %arg2[%c0, %c0_0] : memref<32x128xf32, #tpu.memory_space<vmem>>, vector<32x128xf32>
    %1 = tpu.iota {dimensions = array<i32: 1>} : vector<32x128xi32>
    %c31_i32 = arith.constant 31 : i32
    %2 = vector.broadcast %c31_i32 : i32 to vector<32x128xi32>
    %3 = arith.andi %1, %2 : vector<32x128xi32>
    %c0_i32 = arith.constant 0 : i32
    %4 = vector.broadcast %c0_i32 : i32 to vector<32x128xi32>
    %5 = arith.cmpi eq, %3, %4 : vector<32x128xi32>
    %cst = arith.constant 0.000000e+00 : f32
    %6 = vector.broadcast %cst : f32 to vector<32x128xf32>
    %7 = arith.select %5, %6, %0 : vector<32x128xi1>, vector<32x128xf32>
    %cst_1 = arith.constant 0.000000e+00 : f32
    %8 = vector.broadcast %cst_1 : f32 to vector<32x128xf32>
    %9 = arith.select %5, %0, %8 : vector<32x128xi1>, vector<32x128xf32>
    %c0_2 = arith.constant 0 : index
    %c0_3 = arith.constant 0 : index
    %10 = vector.load %arg1[%c0_2, %c0_3] : memref<128x128xf32, #tpu.memory_space<vmem>>, vector<128x128xf32>
    %cst_4 = arith.constant dense<0.000000e+00> : vector<32x128xf32>
    %11 = tpu.matmul %9, %10, %cst_4 {dimension_numbers = #tpu.dot_dimension_numbers<[1], [0], [0], [1], [0, 0, 1, 1], [], []>, precision = #tpu.contract_precision<fp32>} : vector<32x128xf32>, vector<128x128xf32>, vector<32x128xf32> -> vector<32x128xf32>
    %12 = arith.mulf %7, %7 : vector<32x128xf32>
    %c0_5 = arith.constant 0 : index
    %c0_6 = arith.constant 0 : index
    %13 = vector.load %arg1[%c0_5, %c0_6] : memref<128x128xf32, #tpu.memory_space<vmem>>, vector<128x128xf32>
    %cst_7 = arith.constant dense<0.000000e+00> : vector<32x128xf32>
    %14 = tpu.matmul %12, %13, %cst_7 {dimension_numbers = #tpu.dot_dimension_numbers<[1], [0], [0], [1], [0, 0, 1, 1], [], []>, precision = #tpu.contract_precision<fp32>} : vector<32x128xf32>, vector<128x128xf32>, vector<32x128xf32> -> vector<32x128xf32>
    %cst_8 = arith.constant 1.000000e+00 : f32
    %15 = vector.broadcast %cst_8 : f32 to vector<32x128xf32>
    %16 = arith.mulf %11, %15 : vector<32x128xf32>
    %cst_9 = arith.constant 1.00000012 : f32
    %17 = vector.broadcast %cst_9 : f32 to vector<32x128xf32>
    %18 = arith.maximumf %16, %17 : vector<32x128xf32>
    %19 = arith.mulf %18, %18 : vector<32x128xf32>
    %cst_10 = arith.constant 1.000000e+00 : f32
    %20 = vector.broadcast %cst_10 : f32 to vector<32x128xf32>
    %21 = arith.subf %19, %20 : vector<32x128xf32>
    %cst_11 = arith.constant 0.000000e+00 : f32
    %22 = vector.broadcast %cst_11 : f32 to vector<32x128xf32>
    %23 = arith.maximumf %21, %22 : vector<32x128xf32>
    %24 = math.sqrt %23 : vector<32x128xf32>
    %25 = arith.addf %18, %24 : vector<32x128xf32>
    %26 = math.log %25 : vector<32x128xf32>
    %cst_12 = arith.constant 1.000000e-30 : f32
    %27 = vector.broadcast %cst_12 : f32 to vector<32x128xf32>
    %28 = arith.maximumf %14, %27 : vector<32x128xf32>
    %29 = math.rsqrt %28 : vector<32x128xf32>
    %cst_13 = arith.constant 1.000000e+00 : f32
    %30 = vector.broadcast %cst_13 : f32 to vector<32x128xf32>
    %31 = arith.mulf %30, %26 : vector<32x128xf32>
    %32 = arith.mulf %31, %29 : vector<32x128xf32>
    %33 = arith.mulf %32, %7 : vector<32x128xf32>
    %cst_14 = arith.constant 0.000000e+00 : f32
    %34 = vector.broadcast %cst_14 : f32 to vector<32x128xf32>
    %35 = arith.maximumf %33, %34 : vector<32x128xf32>
    %36 = arith.mulf %35, %35 : vector<32x128xf32>
    %c0_15 = arith.constant 0 : index
    %c0_16 = arith.constant 0 : index
    %37 = vector.load %arg1[%c0_15, %c0_16] : memref<128x128xf32, #tpu.memory_space<vmem>>, vector<128x128xf32>
    %cst_17 = arith.constant dense<0.000000e+00> : vector<32x128xf32>
    %38 = tpu.matmul %36, %37, %cst_17 {dimension_numbers = #tpu.dot_dimension_numbers<[1], [0], [0], [1], [0, 0, 1, 1], [], []>, precision = #tpu.contract_precision<fp32>} : vector<32x128xf32>, vector<128x128xf32>, vector<32x128xf32> -> vector<32x128xf32>
    %cst_18 = arith.constant 1.000000e-30 : f32
    %39 = vector.broadcast %cst_18 : f32 to vector<32x128xf32>
    %40 = arith.maximumf %38, %39 : vector<32x128xf32>
    %41 = math.sqrt %40 : vector<32x128xf32>
    %42 = math.rsqrt %40 : vector<32x128xf32>
    %cst_19 = arith.constant 1.41421354 : f32
    %43 = vector.broadcast %cst_19 : f32 to vector<32x128xf32>
    %44 = arith.mulf %41, %43 : vector<32x128xf32>
    %cst_20 = arith.constant 1.500000e+01 : f32
    %45 = vector.broadcast %cst_20 : f32 to vector<32x128xf32>
    %46 = arith.minimumf %44, %45 : vector<32x128xf32>
    %47 = math.exp %46 : vector<32x128xf32>
    %cst_21 = arith.constant 1.000000e+00 : f32
    %48 = vector.broadcast %cst_21 : f32 to vector<32x128xf32>
    %49 = arith.divf %48, %47 : vector<32x128xf32>
    %50 = arith.subf %47, %49 : vector<32x128xf32>
    %cst_22 = arith.constant 5.000000e-01 : f32
    %51 = vector.broadcast %cst_22 : f32 to vector<32x128xf32>
    %52 = arith.mulf %51, %50 : vector<32x128xf32>
    %53 = arith.addf %47, %49 : vector<32x128xf32>
    %cst_23 = arith.constant 5.000000e-01 : f32
    %54 = vector.broadcast %cst_23 : f32 to vector<32x128xf32>
    %55 = arith.mulf %54, %53 : vector<32x128xf32>
    %cst_24 = arith.constant 0.707106769 : f32
    %56 = vector.broadcast %cst_24 : f32 to vector<32x128xf32>
    %57 = arith.mulf %56, %55 : vector<32x128xf32>
    %cst_25 = arith.constant 0.707106769 : f32
    %58 = vector.broadcast %cst_25 : f32 to vector<32x128xf32>
    %59 = arith.mulf %58, %52 : vector<32x128xf32>
    %60 = arith.mulf %59, %42 : vector<32x128xf32>
    %61 = arith.mulf %60, %35 : vector<32x128xf32>
    %62 = arith.select %5, %57, %61 : vector<32x128xi1>, vector<32x128xf32>
    %c0_26 = arith.constant 0 : index
    %c0_27 = arith.constant 0 : index
    %63 = vector.load %arg3[%c0_26, %c0_27] : memref<32x128xf32, #tpu.memory_space<vmem>>, vector<32x128xf32>
    tpu.vector_store %arg3[%c0_26, %c0_27], %62 {strides = array<i32>} : memref<32x128xf32, #tpu.memory_space<vmem>>, vector<32x128xf32>,
    return
  }
  func.func @transform_0(%arg0: i32) -> (i32, i32) {
    %c0_i32 = arith.constant 0 : i32
    %c0_i32_0 = arith.constant 0 : i32
    %c0_i32_1 = arith.constant 0 : i32
    return %c0_i32, %c0_i32_0 : i32, i32
  }
  func.func @transform_1(%arg0: i32) -> (i32, i32) {
    %c0_i32 = arith.constant 0 : i32
    %c0_i32_0 = arith.constant 0 : i32
    return %arg0, %c0_i32 : i32, i32
  }
  func.func @transform_2(%arg0: i32) -> (i32, i32) {
    %c0_i32 = arith.constant 0 : i32
    %c0_i32_0 = arith.constant 0 : i32
    return %arg0, %c0_i32 : i32, i32
  }
}

</mosaic_0001>

<llo_original>
// kernel: tpu_custom_call.1
$region0: #{tpu_custom_call.1}
  #allocation0 [shape = 'u32[]', space=smem, size = 0x4, offset = 0x4, fixed_abs, tag = 'smem constant byte address 0x4 - core index']
  #allocation1 [shape = 'u32[72,128]{1,0:T(1,128)}', space=vmem, size = 0x9000, scoped, tag = 'internal scratch']
  %s0 = inlined_call_operand.hbm [shape: f32[128,128], index: 0, kind: input, shape index: {}]
  %s1 = inlined_call_operand.hbm [shape: f32[32,128], index: 1, kind: input, shape index: {}]
  %s2 = inlined_call_operand.hbm [shape: f32[32,128], index: 2, kind: output, shape index: {}]
  %s3 = sld [smem:[#allocation0]]
  $region26: #{tpu_custom_call.1} parent=0
    _
  %s5 = ssub.s32 1, %s3
  %s6 = scalar_select 0, %s5, %s3
  $region1: #{tpu_custom_call.1} parent=0
    #allocation2 [shape = 'u8[65536]{0}', space=vmem, size = 0x10000, scoped, tag = 'input window, operand 0, single buffered']
    #allocation3 [shape = 's32[1]{0}', space=sflag, size = 0x4, scoped, tag = 'scoped memory for tpu_custom_call.1']
    #allocation4 [shape = 's32[1]{0}', space=sflag, size = 0x4, scoped, tag = 'scoped memory for tpu_custom_call.1']
    #allocation5 [shape = 'u8[16384]{0}', space=vmem, size = 0x4000, scoped, tag = 'input window, operand 1, single buffered']
    #allocation6 [shape = 's32[1]{0}', space=sflag, size = 0x4, scoped, tag = 'scoped memory for tpu_custom_call.1']
    #allocation7 [shape = 'u8[16384]{0}', space=vmem, size = 0x4000, scoped, tag = 'output window, operand 0, single buffered']
    %7 = vsyncpa [#allocation3], 0
    %8 = vsyncpa [#allocation6], 0
    %9 = vsyncpa [#allocation4], 0
    // Predicated region
    $region2: #{tpu_custom_call.1} parent=1 // pred_check
      _
    $region3: #{tpu_custom_call.1} parent=1 // pred_check_branch
      %11 = sbr.rel (0) target = $region5
    $region4: #{tpu_custom_call.1} parent=1 // pred_region
      %13 = vsyncadd [#allocation3], 0
      %s14 = sshll.u32 %s0, 4
      %s15 = int_to_ptr.hbm [resolvable:$true] %s14
      %s16 = sshll.u32 [#allocation2], 4
      %s17 = int_to_ptr.vmem [resolvable:$true] %s16
      %22 = dma.hbm_to_vmem [thread:$0]  %s15, 2048, %s17, [#allocation3], 128, 128, 8
    $region5: #{tpu_custom_call.1} parent=1 // pred_fallthru
      _
    // Predicated region
    $region6: #{tpu_custom_call.1} parent=1 // pred_check
      _
    $region7: #{tpu_custom_call.1} parent=1 // pred_check_branch
      %24 = sbr.rel (0) target = $region9
    $region8: #{tpu_custom_call.1} parent=1 // pred_region
      %26 = vsyncadd [#allocation6], 0
      %s27 = sshll.u32 %s1, 4
      %s28 = int_to_ptr.hbm [resolvable:$true] %s27
      %s29 = sshll.u32 [#allocation5], 4
      %s30 = int_to_ptr.vmem [resolvable:$true] %s29
      %35 = dma.hbm_to_vmem [thread:$0]  %s28, 512, %s30, [#allocation6], 128, 128, 8
    $region9: #{tpu_custom_call.1} parent=1 // pred_fallthru
      _
    // Predicated region
    $region10: #{tpu_custom_call.1} parent=1 // pred_check
      _
    $region11: #{tpu_custom_call.1} parent=1 // pred_check_branch
      %37 = sbr.rel (0) target = $region13
    $region12: #{tpu_custom_call.1} parent=1 // pred_region
      %39 = dma.done [#allocation3], 2048
    $region13: #{tpu_custom_call.1} parent=1 // pred_fallthru
      _
    // Predicated region
    $region14: #{tpu_custom_call.1} parent=1 // pred_check
      _
    $region15: #{tpu_custom_call.1} parent=1 // pred_check_branch
      %41 = sbr.rel (0) target = $region17
    $region16: #{tpu_custom_call.1} parent=1 // pred_region
      %43 = dma.done [#allocation6], 512
    $region17: #{tpu_custom_call.1} parent=1 // pred_fallthru
      _
    %v44 = vld [vmem:[#allocation5] sm:$0xff]
    %v45 = vld [vmem:[#allocation5 + $0x8] sm:$0xff]
    %v46 = vld [vmem:[#allocation5 + $0x10] sm:$0xff]
    %v47 = vld [vmem:[#allocation5 + $0x18] sm:$0xff]
    %v48 = vlaneseq
    %v49 = vand.u32 %v48, 127
    %v50 = vand.u32 %v49, 31
    %vm51 = vcmp.eq.s32.totalorder %v50, 0
    %v52 = vsel %vm51, 0.0, %v44
    %v53 = vsel %vm51, 0.0, %v45
    %v54 = vsel %vm51, 0.0, %v46
    %v55 = vsel %vm51, 0.0, %v47
    %v56 = vsel %vm51, %v44, 0.0
    %v57 = vsel %vm51, %v45, 0.0
    %v58 = vsel %vm51, %v46, 0.0
    %v59 = vsel %vm51, %v47, 0.0
    %v60 = vld [vmem:[#allocation2] sm:$0xff]
    %v61 = vld [vmem:[#allocation2 + $0x8] sm:$0xff]
    %v62 = vld [vmem:[#allocation2 + $0x10] sm:$0xff]
    %v63 = vld [vmem:[#allocation2 + $0x18] sm:$0xff]
    %v64 = vld [vmem:[#allocation2 + $0x20] sm:$0xff]
    %v65 = vld [vmem:[#allocation2 + $0x28] sm:$0xff]
    %v66 = vld [vmem:[#allocation2 + $0x30] sm:$0xff]
    %v67 = vld [vmem:[#allocation2 + $0x38] sm:$0xff]
    %v68 = vld [vmem:[#allocation2 + $0x40] sm:$0xff]
    %v69 = vld [vmem:[#allocation2 + $0x48] sm:$0xff]
    %v70 = vld [vmem:[#allocation2 + $0x50] sm:$0xff]
    %v71 = vld [vmem:[#allocation2 + $0x58] sm:$0xff]
    %v72 = vld [vmem:[#allocation2 + $0x60] sm:$0xff]
    %v73 = vld [vmem:[#allocation2 + $0x68] sm:$0xff]
    %v74 = vld [vmem:[#allocation2 + $0x70] sm:$0xff]
    %v75 = vld [vmem:[#allocation2 + $0x78] sm:$0xff]
    %v76 = vand.u32 %v75, 4294901760
    %77 = vmatpush.msra.mxu0 %v76
    %v78 = vand.u32 %v74, 4294901760
    %79 = vmatpush.msra.mxu0 %v78
    %v80 = vand.u32 %v73, 4294901760
    %81 = vmatpush.msra.mxu0 %v80
    %v82 = vand.u32 %v72, 4294901760
    %83 = vmatpush.msra.mxu0 %v82
    %v84 = vand.u32 %v71, 4294901760
    %85 = vmatpush.msra.mxu0 %v84
    %v86 = vand.u32 %v70, 4294901760
    %87 = vmatpush.msra.mxu0 %v86
    %v88 = vand.u32 %v69, 4294901760
    %89 = vmatpush.msra.mxu0 %v88
    %v90 = vand.u32 %v68, 4294901760
    %91 = vmatpush.msra.mxu0 %v90
    %v92 = vand.u32 %v67, 4294901760
    %93 = vmatpush.msra.mxu0 %v92
    %v94 = vand.u32 %v66, 4294901760
    %95 = vmatpush.msra.mxu0 %v94
    %v96 = vand.u32 %v65, 4294901760
    %97 = vmatpush.msra.mxu0 %v96
    %v98 = vand.u32 %v64, 4294901760
    %99 = vmatpush.msra.mxu0 %v98
    %v100 = vand.u32 %v63, 4294901760
    %101 = vmatpush.msra.mxu0 %v100
    %v102 = vand.u32 %v62, 4294901760
    %103 = vmatpush.msra.mxu0 %v102
    %v104 = vand.u32 %v61, 4294901760
    %105 = vmatpush.msra.mxu0 %v104
    %v106 = vand.u32 %v60, 4294901760
    %107 = vmatpush.msra.mxu0 %v106
    %v108 = vand.u32 %v56, 4294901760
    %v109 = vsub.f32 %v56, %v108
    %v110 = vand.u32 %v109, 4294901760
    %v111 = vsub.f32 %v109, %v110
    %v112 = vand.u32 %v111, 4294901760
    %113 = vmatmul.f32.gmra.mxu0 %v112
    %v114 = vpop.f32.mrf.mxu0
    %v115 = vadd.f32 0.0, %v114
    %v116 = vand.u32 %v57, 4294901760
    %v117 = vsub.f32 %v57, %v116
    %v118 = vand.u32 %v117, 4294901760
    %v119 = vsub.f32 %v117, %v118
    %v120 = vand.u32 %v119, 4294901760
    %121 = vmatmul.f32.gmra.mxu0 %v120
    %v122 = vpop.f32.mrf.mxu0
    %v123 = vadd.f32 0.0, %v122
    %v124 = vand.u32 %v58, 4294901760
    %v125 = vsub.f32 %v58, %v124
    %v126 = vand.u32 %v125, 4294901760
    %v127 = vsub.f32 %v125, %v126
    %v128 = vand.u32 %v127, 4294901760
    %129 = vmatmul.f32.gmra.mxu0 %v128
    %v130 = vpop.f32.mrf.mxu0
    %v131 = vadd.f32 0.0, %v130
    %v132 = vand.u32 %v59, 4294901760
    %v133 = vsub.f32 %v59, %v132
    %v134 = vand.u32 %v133, 4294901760
    %v135 = vsub.f32 %v133, %v134
    %v136 = vand.u32 %v135, 4294901760
    %137 = vmatmul.f32.gmra.mxu0 %v136
    %v138 = vpop.f32.mrf.mxu0
    %v139 = vadd.f32 0.0, %v138
    %140 = vdwg.mxu0
    %v141 = vand.u32 %v75, 4294901760
    %v142 = vsub.f32 %v75, %v141
    %v143 = vand.u32 %v142, 4294901760
    %v144 = vsub.f32 %v142, %v143
    %v145 = vand.u32 %v144, 4294901760
    %146 = vmatpush.msra.mxu0 %v145
    %v147 = vand.u32 %v74, 4294901760
    %v148 = vsub.f32 %v74, %v147
    %v149 = vand.u32 %v148, 4294901760
    %v150 = vsub.f32 %v148, %v149
    %v151 = vand.u32 %v150, 4294901760
    %152 = vmatpush.msra.mxu0 %v151
    %v153 = vand.u32 %v73, 4294901760
    %v154 = vsub.f32 %v73, %v153
    %v155 = vand.u32 %v154, 4294901760
    %v156 = vsub.f32 %v154, %v155
    %v157 = vand.u32 %v156, 4294901760
    %158 = vmatpush.msra.mxu0 %v157
    %v159 = vand.u32 %v72, 4294901760
    %v160 = vsub.f32 %v72, %v159
    %v161 = vand.u32 %v160, 4294901760
    %v162 = vsub.f32 %v160, %v161
    %v163 = vand.u32 %v162, 4294901760
    %164 = vmatpush.msra.mxu0 %v163
    %v165 = vand.u32 %v71, 4294901760
    %v166 = vsub.f32 %v71, %v165
    %v167 = vand.u32 %v166, 4294901760
    %v168 = vsub.f32 %v166, %v167
    %v169 = vand.u32 %v168, 4294901760
    %170 = vmatpush.msra.mxu0 %v169
    %v171 = vand.u32 %v70, 4294901760
    %v172 = vsub.f32 %v70, %v171
    %v173 = vand.u32 %v172, 4294901760
    %v174 = vsub.f32 %v172, %v173
    %v175 = vand.u32 %v174, 4294901760
    %176 = vmatpush.msra.mxu0 %v175
    %v177 = vand.u32 %v69, 4294901760
    %v178 = vsub.f32 %v69, %v177
    %v179 = vand.u32 %v178, 4294901760
    %v180 = vsub.f32 %v178, %v179
    %v181 = vand.u32 %v180, 4294901760
    %182 = vmatpush.msra.mxu0 %v181
    %v183 = vand.u32 %v68, 4294901760
    %v184 = vsub.f32 %v68, %v183
    %v185 = vand.u32 %v184, 4294901760
    %v186 = vsub.f32 %v184, %v185
    %v187 = vand.u32 %v186, 4294901760
    %188 = vmatpush.msra.mxu0 %v187
    %v189 = vand.u32 %v67, 4294901760
    %v190 = vsub.f32 %v67, %v189
    %v191 = vand.u32 %v190, 4294901760
    %v192 = vsub.f32 %v190, %v191
    %v193 = vand.u32 %v192, 4294901760
    %194 = vmatpush.msra.mxu0 %v193
    %v195 = vand.u32 %v66, 4294901760
    %v196 = vsub.f32 %v66, %v195
    %v197 = vand.u32 %v196, 4294901760
    %v198 = vsub.f32 %v196, %v197
    %v199 = vand.u32 %v198, 4294901760
    %200 = vmatpush.msra.mxu0 %v199
    %v201 = vand.u32 %v65, 4294901760
    %v202 = vsub.f32 %v65, %v201
    %v203 = vand.u32 %v202, 4294901760
    %v204 = vsub.f32 %v202, %v203
    %v205 = vand.u32 %v204, 4294901760
    %206 = vmatpush.msra.mxu0 %v205
    %v207 = vand.u32 %v64, 4294901760
    %v208 = vsub.f32 %v64, %v207
    %v209 = vand.u32 %v208, 4294901760
    %v210 = vsub.f32 %v208, %v209
    %v211 = vand.u32 %v210, 4294901760
    %212 = vmatpush.msra.mxu0 %v211
    %v213 = vand.u32 %v63, 4294901760
    %v214 = vsub.f32 %v63, %v213
    %v215 = vand.u32 %v214, 4294901760
    %v216 = vsub.f32 %v214, %v215
    %v217 = vand.u32 %v216, 4294901760
    %218 = vmatpush.msra.mxu0 %v217
    %v219 = vand.u32 %v62, 4294901760
    %v220 = vsub.f32 %v62, %v219
    %v221 = vand.u32 %v220, 4294901760
    %v222 = vsub.f32 %v220, %v221
    %v223 = vand.u32 %v222, 4294901760
    %224 = vmatpush.msra.mxu0 %v223
    %v225 = vand.u32 %v61, 4294901760
    %v226 = vsub.f32 %v61, %v225
    %v227 = vand.u32 %v226, 4294901760
    %v228 = vsub.f32 %v226, %v227
    %v229 = vand.u32 %v228, 4294901760
    %230 = vmatpush.msra.mxu0 %v229
    %v231 = vand.u32 %v60, 4294901760
    %v232 = vsub.f32 %v60, %v231
    %v233 = vand.u32 %v232, 4294901760
    %v234 = vsub.f32 %v232, %v233
    %v235 = vand.u32 %v234, 4294901760
    %236 = vmatpush.msra.mxu0 %v235
    %v237 = vand.u32 %v56, 4294901760
    %238 = vmatmul.f32.gmra.mxu0 %v237
    %v239 = vpop.f32.mrf.mxu0
    %v240 = vadd.f32 %v115, %v239
    %v241 = vand.u32 %v57, 4294901760
    %242 = vmatmul.f32.gmra.mxu0 %v241
    %v243 = vpop.f32.mrf.mxu0
    %v244 = vadd.f32 %v123, %v243
    %v245 = vand.u32 %v58, 4294901760
    %246 = vmatmul.f32.gmra.mxu0 %v245
    %v247 = vpop.f32.mrf.mxu0
    %v248 = vadd.f32 %v131, %v247
    %v249 = vand.u32 %v59, 4294901760
    %250 = vmatmul.f32.gmra.mxu0 %v249
    %v251 = vpop.f32.mrf.mxu0
    %v252 = vadd.f32 %v139, %v251
    %253 = vdwg.mxu0
    %v254 = vand.u32 %v75, 4294901760
    %v255 = vsub.f32 %v75, %v254
    %256 = vmatpush.msra.mxu0 %v255
    %v257 = vand.u32 %v74, 4294901760
    %v258 = vsub.f32 %v74, %v257
    %259 = vmatpush.msra.mxu0 %v258
    %v260 = vand.u32 %v73, 4294901760
    %v261 = vsub.f32 %v73, %v260
    %262 = vmatpush.msra.mxu0 %v261
    %v263 = vand.u32 %v72, 4294901760
    %v264 = vsub.f32 %v72, %v263
    %265 = vmatpush.msra.mxu0 %v264
    %v266 = vand.u32 %v71, 4294901760
    %v267 = vsub.f32 %v71, %v266
    %268 = vmatpush.msra.mxu0 %v267
    %v269 = vand.u32 %v70, 4294901760
    %v270 = vsub.f32 %v70, %v269
    %271 = vmatpush.msra.mxu0 %v270
    %v272 = vand.u32 %v69, 4294901760
    %v273 = vsub.f32 %v69, %v272
    %274 = vmatpush.msra.mxu0 %v273
    %v275 = vand.u32 %v68, 4294901760
    %v276 = vsub.f32 %v68, %v275
    %277 = vmatpush.msra.mxu0 %v276
    %v278 = vand.u32 %v67, 4294901760
    %v279 = vsub.f32 %v67, %v278
    %280 = vmatpush.msra.mxu0 %v279
    %v281 = vand.u32 %v66, 4294901760
    %v282 = vsub.f32 %v66, %v281
    %283 = vmatpush.msra.mxu0 %v282
    %v284 = vand.u32 %v65, 4294901760
    %v285 = vsub.f32 %v65, %v284
    %286 = vmatpush.msra.mxu0 %v285
    %v287 = vand.u32 %v64, 4294901760
    %v288 = vsub.f32 %v64, %v287
    %289 = vmatpush.msra.mxu0 %v288
    %v290 = vand.u32 %v63, 4294901760
    %v291 = vsub.f32 %v63, %v290
    %292 = vmatpush.msra.mxu0 %v291
    %v293 = vand.u32 %v62, 4294901760
    %v294 = vsub.f32 %v62, %v293
    %295 = vmatpush.msra.mxu0 %v294
    %v296 = vand.u32 %v61, 4294901760
    %v297 = vsub.f32 %v61, %v296
    %298 = vmatpush.msra.mxu0 %v297
    %v299 = vand.u32 %v60, 4294901760
    %v300 = vsub.f32 %v60, %v299
    %301 = vmatpush.msra.mxu0 %v300
    %v302 = vand.u32 %v56, 4294901760
    %v303 = vsub.f32 %v56, %v302
    %304 = vmatmul.f32.gmra.mxu0 %v303
    %v305 = vpop.f32.mrf.mxu0
    %v306 = vadd.f32 %v240, %v305
    %v307 = vand.u32 %v57, 4294901760
    %v308 = vsub.f32 %v57, %v307
    %309 = vmatmul.f32.gmra.mxu0 %v308
    %v310 = vpop.f32.mrf.mxu0
    %v311 = vadd.f32 %v244, %v310
    %v312 = vand.u32 %v58, 4294901760
    %v313 = vsub.f32 %v58, %v312
    %314 = vmatmul.f32.gmra.mxu0 %v313
    %v315 = vpop.f32.mrf.mxu0
    %v316 = vadd.f32 %v248, %v315
    %v317 = vand.u32 %v59, 4294901760
    %v318 = vsub.f32 %v59, %v317
    %319 = vmatmul.f32.gmra.mxu0 %v318
    %v320 = vpop.f32.mrf.mxu0
    %v321 = vadd.f32 %v252, %v320
    %322 = vdwg.mxu0
    %v323 = vand.u32 %v75, 4294901760
    %324 = vmatpush.msra.mxu0 %v323
    %v325 = vand.u32 %v74, 4294901760
    %326 = vmatpush.msra.mxu0 %v325
    %v327 = vand.u32 %v73, 4294901760
    %328 = vmatpush.msra.mxu0 %v327
    %v329 = vand.u32 %v72, 4294901760
    %330 = vmatpush.msra.mxu0 %v329
    %v331 = vand.u32 %v71, 4294901760
    %332 = vmatpush.msra.mxu0 %v331
    %v333 = vand.u32 %v70, 4294901760
    %334 = vmatpush.msra.mxu0 %v333
    %v335 = vand.u32 %v69, 4294901760
    %336 = vmatpush.msra.mxu0 %v335
    %v337 = vand.u32 %v68, 4294901760
    %338 = vmatpush.msra.mxu0 %v337
    %v339 = vand.u32 %v67, 4294901760
    %340 = vmatpush.msra.mxu0 %v339
    %v341 = vand.u32 %v66, 4294901760
    %342 = vmatpush.msra.mxu0 %v341
    %v343 = vand.u32 %v65, 4294901760
    %344 = vmatpush.msra.mxu0 %v343
    %v345 = vand.u32 %v64, 4294901760
    %346 = vmatpush.msra.mxu0 %v345
    %v347 = vand.u32 %v63, 4294901760
    %348 = vmatpush.msra.mxu0 %v347
    %v349 = vand.u32 %v62, 4294901760
    %350 = vmatpush.msra.mxu0 %v349
    %v351 = vand.u32 %v61, 4294901760
    %352 = vmatpush.msra.mxu0 %v351
    %v353 = vand.u32 %v60, 4294901760
    %354 = vmatpush.msra.mxu0 %v353
    %v355 = vand.u32 %v56, 4294901760
    %v356 = vsub.f32 %v56, %v355
    %v357 = vand.u32 %v356, 4294901760
    %358 = vmatmul.f32.gmra.mxu0 %v357
    %v359 = vpop.f32.mrf.mxu0
    %v360 = vadd.f32 %v306, %v359
    %v361 = vand.u32 %v57, 4294901760
    %v362 = vsub.f32 %v57, %v361
    %v363 = vand.u32 %v362, 4294901760
    %364 = vmatmul.f32.gmra.mxu0 %v363
    %v365 = vpop.f32.mrf.mxu0
    %v366 = vadd.f32 %v311, %v365
    %v367 = vand.u32 %v58, 4294901760
    %v368 = vsub.f32 %v58, %v367
    %v369 = vand.u32 %v368, 4294901760
    %370 = vmatmul.f32.gmra.mxu0 %v369
    %v371 = vpop.f32.mrf.mxu0
    %v372 = vadd.f32 %v316, %v371
    %v373 = vand.u32 %v59, 4294901760
    %v374 = vsub.f32 %v59, %v373
    %v375 = vand.u32 %v374, 4294901760
    %376 = vmatmul.f32.gmra.mxu0 %v375
    %v377 = vpop.f32.mrf.mxu0
    %v378 = vadd.f32 %v321, %v377
    %379 = vdwg.mxu0
    %v380 = vand.u32 %v75, 4294901760
    %v381 = vsub.f32 %v75, %v380
    %v382 = vand.u32 %v381, 4294901760
    %383 = vmatpush.msra.mxu0 %v382
    %v384 = vand.u32 %v74, 4294901760
    %v385 = vsub.f32 %v74, %v384
    %v386 = vand.u32 %v385, 4294901760
    %387 = vmatpush.msra.mxu0 %v386
    %v388 = vand.u32 %v73, 4294901760
    %v389 = vsub.f32 %v73, %v388
    %v390 = vand.u32 %v389, 4294901760
    %391 = vmatpush.msra.mxu0 %v390
    %v392 = vand.u32 %v72, 4294901760
    %v393 = vsub.f32 %v72, %v392
    %v394 = vand.u32 %v393, 4294901760
    %395 = vmatpush.msra.mxu0 %v394
    %v396 = vand.u32 %v71, 4294901760
    %v397 = vsub.f32 %v71, %v396
    %v398 = vand.u32 %v397, 4294901760
    %399 = vmatpush.msra.mxu0 %v398
    %v400 = vand.u32 %v70, 4294901760
    %v401 = vsub.f32 %v70, %v400
    %v402 = vand.u32 %v401, 4294901760
    %403 = vmatpush.msra.mxu0 %v402
    %v404 = vand.u32 %v69, 4294901760
    %v405 = vsub.f32 %v69, %v404
    %v406 = vand.u32 %v405, 4294901760
    %407 = vmatpush.msra.mxu0 %v406
    %v408 = vand.u32 %v68, 4294901760
    %v409 = vsub.f32 %v68, %v408
    %v410 = vand.u32 %v409, 4294901760
    %411 = vmatpush.msra.mxu0 %v410
    %v412 = vand.u32 %v67, 4294901760
    %v413 = vsub.f32 %v67, %v412
    %v414 = vand.u32 %v413, 4294901760
    %415 = vmatpush.msra.mxu0 %v414
    %v416 = vand.u32 %v66, 4294901760
    %v417 = vsub.f32 %v66, %v416
    %v418 = vand.u32 %v417, 4294901760
    %419 = vmatpush.msra.mxu0 %v418
    %v420 = vand.u32 %v65, 4294901760
    %v421 = vsub.f32 %v65, %v420
    %v422 = vand.u32 %v421, 4294901760
    %423 = vmatpush.msra.mxu0 %v422
    %v424 = vand.u32 %v64, 4294901760
    %v425 = vsub.f32 %v64, %v424
    %v426 = vand.u32 %v425, 4294901760
    %427 = vmatpush.msra.mxu0 %v426
    %v428 = vand.u32 %v63, 4294901760
    %v429 = vsub.f32 %v63, %v428
    %v430 = vand.u32 %v429, 4294901760
    %431 = vmatpush.msra.mxu0 %v430
    %v432 = vand.u32 %v62, 4294901760
    %v433 = vsub.f32 %v62, %v432
    %v434 = vand.u32 %v433, 4294901760
    %435 = vmatpush.msra.mxu0 %v434
    %v436 = vand.u32 %v61, 4294901760
    %v437 = vsub.f32 %v61, %v436
    %v438 = vand.u32 %v437, 4294901760
    %439 = vmatpush.msra.mxu0 %v438
    %v440 = vand.u32 %v60, 4294901760
    %v441 = vsub.f32 %v60, %v440
    %v442 = vand.u32 %v441, 4294901760
    %443 = vmatpush.msra.mxu0 %v442
    %v444 = vand.u32 %v56, 4294901760
    %445 = vmatmul.f32.gmra.mxu0 %v444
    %v446 = vpop.f32.mrf.mxu0
    %v447 = vadd.f32 %v360, %v446
    %v448 = vand.u32 %v57, 4294901760
    %449 = vmatmul.f32.gmra.mxu0 %v448
    %v450 = vpop.f32.mrf.mxu0
    %v451 = vadd.f32 %v366, %v450
    %v452 = vand.u32 %v58, 4294901760
    %453 = vmatmul.f32.gmra.mxu0 %v452
    %v454 = vpop.f32.mrf.mxu0
    %v455 = vadd.f32 %v372, %v454
    %v456 = vand.u32 %v59, 4294901760
    %457 = vmatmul.f32.gmra.mxu0 %v456
    %v458 = vpop.f32.mrf.mxu0
    %v459 = vadd.f32 %v378, %v458
    %460 = vdwg.mxu0
    %v461 = vand.u32 %v75, 4294901760
    %462 = vmatpush.msra.mxu0 %v461
    %v463 = vand.u32 %v74, 4294901760
    %464 = vmatpush.msra.mxu0 %v463
    %v465 = vand.u32 %v73, 4294901760
    %466 = vmatpush.msra.mxu0 %v465
    %v467 = vand.u32 %v72, 4294901760
    %468 = vmatpush.msra.mxu0 %v467
    %v469 = vand.u32 %v71, 4294901760
    %470 = vmatpush.msra.mxu0 %v469
    %v471 = vand.u32 %v70, 4294901760
    %472 = vmatpush.msra.mxu0 %v471
    %v473 = vand.u32 %v69, 4294901760
    %474 = vmatpush.msra.mxu0 %v473
    %v475 = vand.u32 %v68, 4294901760
    %476 = vmatpush.msra.mxu0 %v475
    %v477 = vand.u32 %v67, 4294901760
    %478 = vmatpush.msra.mxu0 %v477
    %v479 = vand.u32 %v66, 4294901760
    %480 = vmatpush.msra.mxu0 %v479
    %v481 = vand.u32 %v65, 4294901760
    %482 = vmatpush.msra.mxu0 %v481
    %v483 = vand.u32 %v64, 4294901760
    %484 = vmatpush.msra.mxu0 %v483
    %v485 = vand.u32 %v63, 4294901760
    %486 = vmatpush.msra.mxu0 %v485
    %v487 = vand.u32 %v62, 4294901760
    %488 = vmatpush.msra.mxu0 %v487
    %v489 = vand.u32 %v61, 4294901760
    %490 = vmatpush.msra.mxu0 %v489
    %v491 = vand.u32 %v60, 4294901760
    %492 = vmatpush.msra.mxu0 %v491
    %v493 = vand.u32 %v56, 4294901760
    %494 = vmatmul.f32.gmra.mxu0 %v493
    %v495 = vpop.f32.mrf.mxu0
    %v496 = vadd.f32 %v447, %v495
    %v497 = vand.u32 %v57, 4294901760
    %498 = vmatmul.f32.gmra.mxu0 %v497
    %v499 = vpop.f32.mrf.mxu0
    %v500 = vadd.f32 %v451, %v499
    %v501 = vand.u32 %v58, 4294901760
    %502 = vmatmul.f32.gmra.mxu0 %v501
    %v503 = vpop.f32.mrf.mxu0
    %v504 = vadd.f32 %v455, %v503
    %v505 = vand.u32 %v59, 4294901760
    %506 = vmatmul.f32.gmra.mxu0 %v505
    %v507 = vpop.f32.mrf.mxu0
    %v508 = vadd.f32 %v459, %v507
    %509 = vdwg.mxu0
    %v510 = vmul.f32 %v52, %v52
    %v511 = vmul.f32 %v53, %v53
    %v512 = vmul.f32 %v54, %v54
    %v513 = vmul.f32 %v55, %v55
    %v514 = vand.u32 %v75, 4294901760
    %515 = vmatpush.msra.mxu0 %v514
    %v516 = vand.u32 %v74, 4294901760
    %517 = vmatpush.msra.mxu0 %v516
    %v518 = vand.u32 %v73, 4294901760
    %519 = vmatpush.msra.mxu0 %v518
    %v520 = vand.u32 %v72, 4294901760
    %521 = vmatpush.msra.mxu0 %v520
    %v522 = vand.u32 %v71, 4294901760
    %523 = vmatpush.msra.mxu0 %v522
    %v524 = vand.u32 %v70, 4294901760
    %525 = vmatpush.msra.mxu0 %v524
    %v526 = vand.u32 %v69, 4294901760
    %527 = vmatpush.msra.mxu0 %v526
    %v528 = vand.u32 %v68, 4294901760
    %529 = vmatpush.msra.mxu0 %v528
    %v530 = vand.u32 %v67, 4294901760
    %531 = vmatpush.msra.mxu0 %v530
    %v532 = vand.u32 %v66, 4294901760
    %533 = vmatpush.msra.mxu0 %v532
    %v534 = vand.u32 %v65, 4294901760
    %535 = vmatpush.msra.mxu0 %v534
    %v536 = vand.u32 %v64, 4294901760
    %537 = vmatpush.msra.mxu0 %v536
    %v538 = vand.u32 %v63, 4294901760
    %539 = vmatpush.msra.mxu0 %v538
    %v540 = vand.u32 %v62, 4294901760
    %541 = vmatpush.msra.mxu0 %v540
    %v542 = vand.u32 %v61, 4294901760
    %543 = vmatpush.msra.mxu0 %v542
    %v544 = vand.u32 %v60, 4294901760
    %545 = vmatpush.msra.mxu0 %v544
    %v546 = vand.u32 %v510, 4294901760
    %v547 = vsub.f32 %v510, %v546
    %v548 = vand.u32 %v547, 4294901760
    %v549 = vsub.f32 %v547, %v548
    %v550 = vand.u32 %v549, 4294901760
    %551 = vmatmul.f32.gmra.mxu0 %v550
    %v552 = vpop.f32.mrf.mxu0
    %v553 = vadd.f32 0.0, %v552
    %v554 = vand.u32 %v511, 4294901760
    %v555 = vsub.f32 %v511, %v554
    %v556 = vand.u32 %v555, 4294901760
    %v557 = vsub.f32 %v555, %v556
    %v558 = vand.u32 %v557, 4294901760
    %559 = vmatmul.f32.gmra.mxu0 %v558
    %v560 = vpop.f32.mrf.mxu0
    %v561 = vadd.f32 0.0, %v560
    %v562 = vand.u32 %v512, 4294901760
    %v563 = vsub.f32 %v512, %v562
    %v564 = vand.u32 %v563, 4294901760
    %v565 = vsub.f32 %v563, %v564
    %v566 = vand.u32 %v565, 4294901760
    %567 = vmatmul.f32.gmra.mxu0 %v566
    %v568 = vpop.f32.mrf.mxu0
    %v569 = vadd.f32 0.0, %v568
    %v570 = vand.u32 %v513, 4294901760
    %v571 = vsub.f32 %v513, %v570
    %v572 = vand.u32 %v571, 4294901760
    %v573 = vsub.f32 %v571, %v572
    %v574 = vand.u32 %v573, 4294901760
    %575 = vmatmul.f32.gmra.mxu0 %v574
    %v576 = vpop.f32.mrf.mxu0
    %v577 = vadd.f32 0.0, %v576
    %578 = vdwg.mxu0
    %v579 = vand.u32 %v75, 4294901760
    %v580 = vsub.f32 %v75, %v579
    %v581 = vand.u32 %v580, 4294901760
    %v582 = vsub.f32 %v580, %v581
    %v583 = vand.u32 %v582, 4294901760
    %584 = vmatpush.msra.mxu0 %v583
    %v585 = vand.u32 %v74, 4294901760
    %v586 = vsub.f32 %v74, %v585
    %v587 = vand.u32 %v586, 4294901760
    %v588 = vsub.f32 %v586, %v587
    %v589 = vand.u32 %v588, 4294901760
    %590 = vmatpush.msra.mxu0 %v589
    %v591 = vand.u32 %v73, 4294901760
    %v592 = vsub.f32 %v73, %v591
    %v593 = vand.u32 %v592, 4294901760
    %v594 = vsub.f32 %v592, %v593
    %v595 = vand.u32 %v594, 4294901760
    %596 = vmatpush.msra.mxu0 %v595
    %v597 = vand.u32 %v72, 4294901760
    %v598 = vsub.f32 %v72, %v597
    %v599 = vand.u32 %v598, 4294901760
    %v600 = vsub.f32 %v598, %v599
    %v601 = vand.u32 %v600, 4294901760
    %602 = vmatpush.msra.mxu0 %v601
    %v603 = vand.u32 %v71, 4294901760
    %v604 = vsub.f32 %v71, %v603
    %v605 = vand.u32 %v604, 4294901760
    %v606 = vsub.f32 %v604, %v605
    %v607 = vand.u32 %v606, 4294901760
    %608 = vmatpush.msra.mxu0 %v607
    %v609 = vand.u32 %v70, 4294901760
    %v610 = vsub.f32 %v70, %v609
    %v611 = vand.u32 %v610, 4294901760
    %v612 = vsub.f32 %v610, %v611
    %v613 = vand.u32 %v612, 4294901760
    %614 = vmatpush.msra.mxu0 %v613
    %v615 = vand.u32 %v69, 4294901760
    %v616 = vsub.f32 %v69, %v615
    %v617 = vand.u32 %v616, 4294901760
    %v618 = vsub.f32 %v616, %v617
    %v619 = vand.u32 %v618, 4294901760
    %620 = vmatpush.msra.mxu0 %v619
    %v621 = vand.u32 %v68, 4294901760
    %v622 = vsub.f32 %v68, %v621
    %v623 = vand.u32 %v622, 4294901760
    %v624 = vsub.f32 %v622, %v623
    %v625 = vand.u32 %v624, 4294901760
    %626 = vmatpush.msra.mxu0 %v625
    %v627 = vand.u32 %v67, 4294901760
    %v628 = vsub.f32 %v67, %v627
    %v629 = vand.u32 %v628, 4294901760
    %v630 = vsub.f32 %v628, %v629
    %v631 = vand.u32 %v630, 4294901760
    %632 = vmatpush.msra.mxu0 %v631
    %v633 = vand.u32 %v66, 4294901760
    %v634 = vsub.f32 %v66, %v633
    %v635 = vand.u32 %v634, 4294901760
    %v636 = vsub.f32 %v634, %v635
    %v637 = vand.u32 %v636, 4294901760
    %638 = vmatpush.msra.mxu0 %v637
    %v639 = vand.u32 %v65, 4294901760
    %v640 = vsub.f32 %v65, %v639
    %v641 = vand.u32 %v640, 4294901760
    %v642 = vsub.f32 %v640, %v641
    %v643 = vand.u32 %v642, 4294901760
    %644 = vmatpush.msra.mxu0 %v643
    %v645 = vand.u32 %v64, 4294901760
    %v646 = vsub.f32 %v64, %v645
    %v647 = vand.u32 %v646, 4294901760
    %v648 = vsub.f32 %v646, %v647
    %v649 = vand.u32 %v648, 4294901760
    %650 = vmatpush.msra.mxu0 %v649
    %v651 = vand.u32 %v63, 4294901760
    %v652 = vsub.f32 %v63, %v651
    %v653 = vand.u32 %v652, 4294901760
    %v654 = vsub.f32 %v652, %v653
    %v655 = vand.u32 %v654, 4294901760
    %656 = vmatpush.msra.mxu0 %v655
    %v657 = vand.u32 %v62, 4294901760
    %v658 = vsub.f32 %v62, %v657
    %v659 = vand.u32 %v658, 4294901760
    %v660 = vsub.f32 %v658, %v659
    %v661 = vand.u32 %v660, 4294901760
    %662 = vmatpush.msra.mxu0 %v661
    %v663 = vand.u32 %v61, 4294901760
    %v664 = vsub.f32 %v61, %v663
    %v665 = vand.u32 %v664, 4294901760
    %v666 = vsub.f32 %v664, %v665
    %v667 = vand.u32 %v666, 4294901760
    %668 = vmatpush.msra.mxu0 %v667
    %v669 = vand.u32 %v60, 4294901760
    %v670 = vsub.f32 %v60, %v669
    %v671 = vand.u32 %v670, 4294901760
    %v672 = vsub.f32 %v670, %v671
    %v673 = vand.u32 %v672, 4294901760
    %674 = vmatpush.msra.mxu0 %v673
    %v675 = vand.u32 %v510, 4294901760
    %676 = vmatmul.f32.gmra.mxu0 %v675
    %v677 = vpop.f32.mrf.mxu0
    %v678 = vadd.f32 %v553, %v677
    %v679 = vand.u32 %v511, 4294901760
    %680 = vmatmul.f32.gmra.mxu0 %v679
    %v681 = vpop.f32.mrf.mxu0
    %v682 = vadd.f32 %v561, %v681
    %v683 = vand.u32 %v512, 4294901760
    %684 = vmatmul.f32.gmra.mxu0 %v683
    %v685 = vpop.f32.mrf.mxu0
    %v686 = vadd.f32 %v569, %v685
    %v687 = vand.u32 %v513, 4294901760
    %688 = vmatmul.f32.gmra.mxu0 %v687
    %v689 = vpop.f32.mrf.mxu0
    %v690 = vadd.f32 %v577, %v689
    %691 = vdwg.mxu0
    %v692 = vand.u32 %v75, 4294901760
    %v693 = vsub.f32 %v75, %v692
    %694 = vmatpush.msra.mxu0 %v693
    %v695 = vand.u32 %v74, 4294901760
    %v696 = vsub.f32 %v74, %v695
    %697 = vmatpush.msra.mxu0 %v696
    %v698 = vand.u32 %v73, 4294901760
    %v699 = vsub.f32 %v73, %v698
    %700 = vmatpush.msra.mxu0 %v699
    %v701 = vand.u32 %v72, 4294901760
    %v702 = vsub.f32 %v72, %v701
    %703 = vmatpush.msra.mxu0 %v702
    %v704 = vand.u32 %v71, 4294901760
    %v705 = vsub.f32 %v71, %v704
    %706 = vmatpush.msra.mxu0 %v705
    %v707 = vand.u32 %v70, 4294901760
    %v708 = vsub.f32 %v70, %v707
    %709 = vmatpush.msra.mxu0 %v708
    %v710 = vand.u32 %v69, 4294901760
    %v711 = vsub.f32 %v69, %v710
    %712 = vmatpush.msra.mxu0 %v711
    %v713 = vand.u32 %v68, 4294901760
    %v714 = vsub.f32 %v68, %v713
    %715 = vmatpush.msra.mxu0 %v714
    %v716 = vand.u32 %v67, 4294901760
    %v717 = vsub.f32 %v67, %v716
    %718 = vmatpush.msra.mxu0 %v717
    %v719 = vand.u32 %v66, 4294901760
    %v720 = vsub.f32 %v66, %v719
    %721 = vmatpush.msra.mxu0 %v720
    %v722 = vand.u32 %v65, 4294901760
    %v723 = vsub.f32 %v65, %v722
    %724 = vmatpush.msra.mxu0 %v723
    %v725 = vand.u32 %v64, 4294901760
    %v726 = vsub.f32 %v64, %v725
    %727 = vmatpush.msra.mxu0 %v726
    %v728 = vand.u32 %v63, 4294901760
    %v729 = vsub.f32 %v63, %v728
    %730 = vmatpush.msra.mxu0 %v729
    %v731 = vand.u32 %v62, 4294901760
    %v732 = vsub.f32 %v62, %v731
    %733 = vmatpush.msra.mxu0 %v732
    %v734 = vand.u32 %v61, 4294901760
    %v735 = vsub.f32 %v61, %v734
    %736 = vmatpush.msra.mxu0 %v735
    %v737 = vand.u32 %v60, 4294901760
    %v738 = vsub.f32 %v60, %v737
    %739 = vmatpush.msra.mxu0 %v738
    %v740 = vand.u32 %v510, 4294901760
    %v741 = vsub.f32 %v510, %v740
    %742 = vmatmul.f32.gmra.mxu0 %v741
    %v743 = vpop.f32.mrf.mxu0
    %v744 = vadd.f32 %v678, %v743
    %v745 = vand.u32 %v511, 4294901760
    %v746 = vsub.f32 %v511, %v745
    %747 = vmatmul.f32.gmra.mxu0 %v746
    %v748 = vpop.f32.mrf.mxu0
    %v749 = vadd.f32 %v682, %v748
    %v750 = vand.u32 %v512, 4294901760
    %v751 = vsub.f32 %v512, %v750
    %752 = vmatmul.f32.gmra.mxu0 %v751
    %v753 = vpop.f32.mrf.mxu0
    %v754 = vadd.f32 %v686, %v753
    %v755 = vand.u32 %v513, 4294901760
    %v756 = vsub.f32 %v513, %v755
    %757 = vmatmul.f32.gmra.mxu0 %v756
    %v758 = vpop.f32.mrf.mxu0
    %v759 = vadd.f32 %v690, %v758
    %760 = vdwg.mxu0
    %v761 = vand.u32 %v75, 4294901760
    %762 = vmatpush.msra.mxu0 %v761
    %v763 = vand.u32 %v74, 4294901760
    %764 = vmatpush.msra.mxu0 %v763
    %v765 = vand.u32 %v73, 4294901760
    %766 = vmatpush.msra.mxu0 %v765
    %v767 = vand.u32 %v72, 4294901760
    %768 = vmatpush.msra.mxu0 %v767
    %v769 = vand.u32 %v71, 4294901760
    %770 = vmatpush.msra.mxu0 %v769
    %v771 = vand.u32 %v70, 4294901760
    %772 = vmatpush.msra.mxu0 %v771
    %v773 = vand.u32 %v69, 4294901760
    %774 = vmatpush.msra.mxu0 %v773
    %v775 = vand.u32 %v68, 4294901760
    %776 = vmatpush.msra.mxu0 %v775
    %v777 = vand.u32 %v67, 4294901760
    %778 = vmatpush.msra.mxu0 %v777
    %v779 = vand.u32 %v66, 4294901760
    %780 = vmatpush.msra.mxu0 %v779
    %v781 = vand.u32 %v65, 4294901760
    %782 = vmatpush.msra.mxu0 %v781
    %v783 = vand.u32 %v64, 4294901760
    %784 = vmatpush.msra.mxu0 %v783
    %v785 = vand.u32 %v63, 4294901760
    %786 = vmatpush.msra.mxu0 %v785
    %v787 = vand.u32 %v62, 4294901760
    %788 = vmatpush.msra.mxu0 %v787
    %v789 = vand.u32 %v61, 4294901760
    %790 = vmatpush.msra.mxu0 %v789
    %v791 = vand.u32 %v60, 4294901760
    %792 = vmatpush.msra.mxu0 %v791
    %v793 = vand.u32 %v510, 4294901760
    %v794 = vsub.f32 %v510, %v793
    %v795 = vand.u32 %v794, 4294901760
    %796 = vmatmul.f32.gmra.mxu0 %v795
    %v797 = vpop.f32.mrf.mxu0
    %v798 = vadd.f32 %v744, %v797
    %v799 = vand.u32 %v511, 4294901760
    %v800 = vsub.f32 %v511, %v799
    %v801 = vand.u32 %v800, 4294901760
    %802 = vmatmul.f32.gmra.mxu0 %v801
    %v803 = vpop.f32.mrf.mxu0
    %v804 = vadd.f32 %v749, %v803
    %v805 = vand.u32 %v512, 4294901760
    %v806 = vsub.f32 %v512, %v805
    %v807 = vand.u32 %v806, 4294901760
    %808 = vmatmul.f32.gmra.mxu0 %v807
    %v809 = vpop.f32.mrf.mxu0
    %v810 = vadd.f32 %v754, %v809
    %v811 = vand.u32 %v513, 4294901760
    %v812 = vsub.f32 %v513, %v811
    %v813 = vand.u32 %v812, 4294901760
    %814 = vmatmul.f32.gmra.mxu0 %v813
    %v815 = vpop.f32.mrf.mxu0
    %v816 = vadd.f32 %v759, %v815
    %817 = vdwg.mxu0
    %v818 = vand.u32 %v75, 4294901760
    %v819 = vsub.f32 %v75, %v818
    %v820 = vand.u32 %v819, 4294901760
    %821 = vmatpush.msra.mxu0 %v820
    %v822 = vand.u32 %v74, 4294901760
    %v823 = vsub.f32 %v74, %v822
    %v824 = vand.u32 %v823, 4294901760
    %825 = vmatpush.msra.mxu0 %v824
    %v826 = vand.u32 %v73, 4294901760
    %v827 = vsub.f32 %v73, %v826
    %v828 = vand.u32 %v827, 4294901760
    %829 = vmatpush.msra.mxu0 %v828
    %v830 = vand.u32 %v72, 4294901760
    %v831 = vsub.f32 %v72, %v830
    %v832 = vand.u32 %v831, 4294901760
    %833 = vmatpush.msra.mxu0 %v832
    %v834 = vand.u32 %v71, 4294901760
    %v835 = vsub.f32 %v71, %v834
    %v836 = vand.u32 %v835, 4294901760
    %837 = vmatpush.msra.mxu0 %v836
    %v838 = vand.u32 %v70, 4294901760
    %v839 = vsub.f32 %v70, %v838
    %v840 = vand.u32 %v839, 4294901760
    %841 = vmatpush.msra.mxu0 %v840
    %v842 = vand.u32 %v69, 4294901760
    %v843 = vsub.f32 %v69, %v842
    %v844 = vand.u32 %v843, 4294901760
    %845 = vmatpush.msra.mxu0 %v844
    %v846 = vand.u32 %v68, 4294901760
    %v847 = vsub.f32 %v68, %v846
    %v848 = vand.u32 %v847, 4294901760
    %849 = vmatpush.msra.mxu0 %v848
    %v850 = vand.u32 %v67, 4294901760
    %v851 = vsub.f32 %v67, %v850
    %v852 = vand.u32 %v851, 4294901760
    %853 = vmatpush.msra.mxu0 %v852
    %v854 = vand.u32 %v66, 4294901760
    %v855 = vsub.f32 %v66, %v854
    %v856 = vand.u32 %v855, 4294901760
    %857 = vmatpush.msra.mxu0 %v856
    %v858 = vand.u32 %v65, 4294901760
    %v859 = vsub.f32 %v65, %v858
    %v860 = vand.u32 %v859, 4294901760
    %861 = vmatpush.msra.mxu0 %v860
    %v862 = vand.u32 %v64, 4294901760
    %v863 = vsub.f32 %v64, %v862
    %v864 = vand.u32 %v863, 4294901760
    %865 = vmatpush.msra.mxu0 %v864
    %v866 = vand.u32 %v63, 4294901760
    %v867 = vsub.f32 %v63, %v866
    %v868 = vand.u32 %v867, 4294901760
    %869 = vmatpush.msra.mxu0 %v868
    %v870 = vand.u32 %v62, 4294901760
    %v871 = vsub.f32 %v62, %v870
    %v872 = vand.u32 %v871, 4294901760
    %873 = vmatpush.msra.mxu0 %v872
    %v874 = vand.u32 %v61, 4294901760
    %v875 = vsub.f32 %v61, %v874
    %v876 = vand.u32 %v875, 4294901760
    %877 = vmatpush.msra.mxu0 %v876
    %v878 = vand.u32 %v60, 4294901760
    %v879 = vsub.f32 %v60, %v878
    %v880 = vand.u32 %v879, 4294901760
    %881 = vmatpush.msra.mxu0 %v880
    %v882 = vand.u32 %v510, 4294901760
    %883 = vmatmul.f32.gmra.mxu0 %v882
    %v884 = vpop.f32.mrf.mxu0
    %v885 = vadd.f32 %v798, %v884
    %v886 = vand.u32 %v511, 4294901760
    %887 = vmatmul.f32.gmra.mxu0 %v886
    %v888 = vpop.f32.mrf.mxu0
    %v889 = vadd.f32 %v804, %v888
    %v890 = vand.u32 %v512, 4294901760
    %891 = vmatmul.f32.gmra.mxu0 %v890
    %v892 = vpop.f32.mrf.mxu0
    %v893 = vadd.f32 %v810, %v892
    %v894 = vand.u32 %v513, 4294901760
    %895 = vmatmul.f32.gmra.mxu0 %v894
    %v896 = vpop.f32.mrf.mxu0
    %v897 = vadd.f32 %v816, %v896
    %898 = vdwg.mxu0
    %v899 = vand.u32 %v75, 4294901760
    %900 = vmatpush.msra.mxu0 %v899
    %v901 = vand.u32 %v74, 4294901760
    %902 = vmatpush.msra.mxu0 %v901
    %v903 = vand.u32 %v73, 4294901760
    %904 = vmatpush.msra.mxu0 %v903
    %v905 = vand.u32 %v72, 4294901760
    %906 = vmatpush.msra.mxu0 %v905
    %v907 = vand.u32 %v71, 4294901760
    %908 = vmatpush.msra.mxu0 %v907
    %v909 = vand.u32 %v70, 4294901760
    %910 = vmatpush.msra.mxu0 %v909
    %v911 = vand.u32 %v69, 4294901760
    %912 = vmatpush.msra.mxu0 %v911
    %v913 = vand.u32 %v68, 4294901760
    %914 = vmatpush.msra.mxu0 %v913
    %v915 = vand.u32 %v67, 4294901760
    %916 = vmatpush.msra.mxu0 %v915
    %v917 = vand.u32 %v66, 4294901760
    %918 = vmatpush.msra.mxu0 %v917
    %v919 = vand.u32 %v65, 4294901760
    %920 = vmatpush.msra.mxu0 %v919
    %v921 = vand.u32 %v64, 4294901760
    %922 = vmatpush.msra.mxu0 %v921
    %v923 = vand.u32 %v63, 4294901760
    %924 = vmatpush.msra.mxu0 %v923
    %v925 = vand.u32 %v62, 4294901760
    %926 = vmatpush.msra.mxu0 %v925
    %v927 = vand.u32 %v61, 4294901760
    %928 = vmatpush.msra.mxu0 %v927
    %v929 = vand.u32 %v60, 4294901760
    %930 = vmatpush.msra.mxu0 %v929
    %v931 = vand.u32 %v510, 4294901760
    %932 = vmatmul.f32.gmra.mxu0 %v931
    %v933 = vpop.f32.mrf.mxu0
    %v934 = vadd.f32 %v885, %v933
    %v935 = vand.u32 %v511, 4294901760
    %936 = vmatmul.f32.gmra.mxu0 %v935
    %v937 = vpop.f32.mrf.mxu0
    %v938 = vadd.f32 %v889, %v937
    %v939 = vand.u32 %v512, 4294901760
    %940 = vmatmul.f32.gmra.mxu0 %v939
    %v941 = vpop.f32.mrf.mxu0
    %v942 = vadd.f32 %v893, %v941
    %v943 = vand.u32 %v513, 4294901760
    %944 = vmatmul.f32.gmra.mxu0 %v943
    %v945 = vpop.f32.mrf.mxu0
    %v946 = vadd.f32 %v897, %v945
    %947 = vdwg.mxu0
    %v948 = vmax.f32 %v496, 1.0000001
    %v949 = vmax.f32 %v500, 1.0000001
    %v950 = vmax.f32 %v504, 1.0000001
    %v951 = vmax.f32 %v508, 1.0000001
    %v952 = vmul.f32 %v948, %v948
    %v953 = vmul.f32 %v949, %v949
    %v954 = vmul.f32 %v950, %v950
    %v955 = vmul.f32 %v951, %v951
    %v956 = vsub.f32 %v952, 1.0
    %v957 = vsub.f32 %v953, 1.0
    %v958 = vsub.f32 %v954, 1.0
    %v959 = vsub.f32 %v955, 1.0
    %v960 = vmax.f32 %v956, 0.0
    %v961 = vmax.f32 %v957, 0.0
    %v962 = vmax.f32 %v958, 0.0
    %v963 = vmax.f32 %v959, 0.0
    %v964 = vrsqrt.pop %v960
    %v965 = vmul.f32 %v964, %v960
    %v966 = vmul.f32 %v965, %v964
    %v967 = vmul.f32 0.5, %v966
    %v968 = vsub.f32 1.5, %v967
    %v969 = vmul.f32 %v964, %v968
    %v970 = vmul.f32 %v960, %v969
    %vm971 = vcmp.eq.f32.partialorder %v960, inf
    %v972 = vsel %vm971, %v960, %v970
    %vm973 = vcmp.eq.f32.partialorder %v960, 0.0
    %v974 = vand.u32 %v960, 2147483648
    %v975 = vsel %vm973, %v974, %v972
    %v976 = vrsqrt.pop %v961
    %v977 = vmul.f32 %v976, %v961
    %v978 = vmul.f32 %v977, %v976
    %v979 = vmul.f32 0.5, %v978
    %v980 = vsub.f32 1.5, %v979
    %v981 = vmul.f32 %v976, %v980
    %v982 = vmul.f32 %v961, %v981
    %vm983 = vcmp.eq.f32.partialorder %v961, inf
    %v984 = vsel %vm983, %v961, %v982
    %vm985 = vcmp.eq.f32.partialorder %v961, 0.0
    %v986 = vand.u32 %v961, 2147483648
    %v987 = vsel %vm985, %v986, %v984
    %v988 = vrsqrt.pop %v962
    %v989 = vmul.f32 %v988, %v962
    %v990 = vmul.f32 %v989, %v988
    %v991 = vmul.f32 0.5, %v990
    %v992 = vsub.f32 1.5, %v991
    %v993 = vmul.f32 %v988, %v992
    %v994 = vmul.f32 %v962, %v993
    %vm995 = vcmp.eq.f32.partialorder %v962, inf
    %v996 = vsel %vm995, %v962, %v994
    %vm997 = vcmp.eq.f32.partialorder %v962, 0.0
    %v998 = vand.u32 %v962, 2147483648
    %v999 = vsel %vm997, %v998, %v996
    %v1000 = vrsqrt.pop %v963
    %v1001 = vmul.f32 %v1000, %v963
    %v1002 = vmul.f32 %v1001, %v1000
    %v1003 = vmul.f32 0.5, %v1002
    %v1004 = vsub.f32 1.5, %v1003
    %v1005 = vmul.f32 %v1000, %v1004
    %v1006 = vmul.f32 %v963, %v1005
    %vm1007 = vcmp.eq.f32.partialorder %v963, inf
    %v1008 = vsel %vm1007, %v963, %v1006
    %vm1009 = vcmp.eq.f32.partialorder %v963, 0.0
    %v1010 = vand.u32 %v963, 2147483648
    %v1011 = vsel %vm1009, %v1010, %v1008
    %v1012 = vadd.f32 %v948, %v975
    %v1013 = vadd.f32 %v949, %v987
    %v1014 = vadd.f32 %v950, %v999
    %v1015 = vadd.f32 %v951, %v1011
    %v1016 = vlog2.pop %v1012
    %v1017 = vmul.f32 %v1016, 0.6931472
    %v1018 = vlog2.pop %v1013
    %v1019 = vmul.f32 %v1018, 0.6931472
    %v1020 = vlog2.pop %v1014
    %v1021 = vmul.f32 %v1020, 0.6931472
    %v1022 = vlog2.pop %v1015
    %v1023 = vmul.f32 %v1022, 0.6931472
    %v1024 = vmax.f32 %v934, 1e-30
    %v1025 = vmax.f32 %v938, 1e-30
    %v1026 = vmax.f32 %v942, 1e-30
    %v1027 = vmax.f32 %v946, 1e-30
    %v1028 = vrsqrt.pop %v1024
    %v1029 = vmul.f32 %v1028, %v1024
    %v1030 = vmul.f32 %v1029, %v1028
    %v1031 = vmul.f32 0.5, %v1030
    %v1032 = vsub.f32 1.5, %v1031
    %v1033 = vmul.f32 %v1028, %v1032
    %vm1034 = vweird.f32 %v1024
    %vm1035 = vweird.f32 %v1028
    %vm1036 = vmor %vm1034, %vm1035
    %v1037 = vsel %vm1036, %v1028, %v1033
    %v1038 = vrsqrt.pop %v1025
    %v1039 = vmul.f32 %v1038, %v1025
    %v1040 = vmul.f32 %v1039, %v1038
    %v1041 = vmul.f32 0.5, %v1040
    %v1042 = vsub.f32 1.5, %v1041
    %v1043 = vmul.f32 %v1038, %v1042
    %vm1044 = vweird.f32 %v1025
    %vm1045 = vweird.f32 %v1038
    %vm1046 = vmor %vm1044, %vm1045
    %v1047 = vsel %vm1046, %v1038, %v1043
    %v1048 = vrsqrt.pop %v1026
    %v1049 = vmul.f32 %v1048, %v1026
    %v1050 = vmul.f32 %v1049, %v1048
    %v1051 = vmul.f32 0.5, %v1050
    %v1052 = vsub.f32 1.5, %v1051
    %v1053 = vmul.f32 %v1048, %v1052
    %vm1054 = vweird.f32 %v1026
    %vm1055 = vweird.f32 %v1048
    %vm1056 = vmor %vm1054, %vm1055
    %v1057 = vsel %vm1056, %v1048, %v1053
    %v1058 = vrsqrt.pop %v1027
    %v1059 = vmul.f32 %v1058, %v1027
    %v1060 = vmul.f32 %v1059, %v1058
    %v1061 = vmul.f32 0.5, %v1060
    %v1062 = vsub.f32 1.5, %v1061
    %v1063 = vmul.f32 %v1058, %v1062
    %vm1064 = vweird.f32 %v1027
    %vm1065 = vweird.f32 %v1058
    %vm1066 = vmor %vm1064, %vm1065
    %v1067 = vsel %vm1066, %v1058, %v1063
    %v1068 = vmul.f32 %v1017, %v1037
    %v1069 = vmul.f32 %v1019, %v1047
    %v1070 = vmul.f32 %v1021, %v1057
    %v1071 = vmul.f32 %v1023, %v1067
    %v1072 = vmul.f32 %v1068, %v52
    %v1073 = vmul.f32 %v1069, %v53
    %v1074 = vmul.f32 %v1070, %v54
    %v1075 = vmul.f32 %v1071, %v55
    %v1076 = vmax.f32 %v1072, 0.0
    %v1077 = vmax.f32 %v1073, 0.0
    %v1078 = vmax.f32 %v1074, 0.0
    %v1079 = vmax.f32 %v1075, 0.0
    %v1080 = vmul.f32 %v1076, %v1076
    %v1081 = vmul.f32 %v1077, %v1077
    %v1082 = vmul.f32 %v1078, %v1078
    %v1083 = vmul.f32 %v1079, %v1079
    %v1084 = vand.u32 %v75, 4294901760
    %1085 = vmatpush.msra.mxu0 %v1084
    %v1086 = vand.u32 %v74, 4294901760
    %1087 = vmatpush.msra.mxu0 %v1086
    %v1088 = vand.u32 %v73, 4294901760
    %1089 = vmatpush.msra.mxu0 %v1088
    %v1090 = vand.u32 %v72, 4294901760
    %1091 = vmatpush.msra.mxu0 %v1090
    %v1092 = vand.u32 %v71, 4294901760
    %1093 = vmatpush.msra.mxu0 %v1092
    %v1094 = vand.u32 %v70, 4294901760
    %1095 = vmatpush.msra.mxu0 %v1094
    %v1096 = vand.u32 %v69, 4294901760
    %1097 = vmatpush.msra.mxu0 %v1096
    %v1098 = vand.u32 %v68, 4294901760
    %1099 = vmatpush.msra.mxu0 %v1098
    %v1100 = vand.u32 %v67, 4294901760
    %1101 = vmatpush.msra.mxu0 %v1100
    %v1102 = vand.u32 %v66, 4294901760
    %1103 = vmatpush.msra.mxu0 %v1102
    %v1104 = vand.u32 %v65, 4294901760
    %1105 = vmatpush.msra.mxu0 %v1104
    %v1106 = vand.u32 %v64, 4294901760
    %1107 = vmatpush.msra.mxu0 %v1106
    %v1108 = vand.u32 %v63, 4294901760
    %1109 = vmatpush.msra.mxu0 %v1108
    %v1110 = vand.u32 %v62, 4294901760
    %1111 = vmatpush.msra.mxu0 %v1110
    %v1112 = vand.u32 %v61, 4294901760
    %1113 = vmatpush.msra.mxu0 %v1112
    %v1114 = vand.u32 %v60, 4294901760
    %1115 = vmatpush.msra.mxu0 %v1114
    %v1116 = vand.u32 %v1080, 4294901760
    %v1117 = vsub.f32 %v1080, %v1116
    %v1118 = vand.u32 %v1117, 4294901760
    %v1119 = vsub.f32 %v1117, %v1118
    %v1120 = vand.u32 %v1119, 4294901760
    %1121 = vmatmul.f32.gmra.mxu0 %v1120
    %v1122 = vpop.f32.mrf.mxu0
    %v1123 = vadd.f32 0.0, %v1122
    %v1124 = vand.u32 %v1081, 4294901760
    %v1125 = vsub.f32 %v1081, %v1124
    %v1126 = vand.u32 %v1125, 4294901760
    %v1127 = vsub.f32 %v1125, %v1126
    %v1128 = vand.u32 %v1127, 4294901760
    %1129 = vmatmul.f32.gmra.mxu0 %v1128
    %v1130 = vpop.f32.mrf.mxu0
    %v1131 = vadd.f32 0.0, %v1130
    %v1132 = vand.u32 %v1082, 4294901760
    %v1133 = vsub.f32 %v1082, %v1132
    %v1134 = vand.u32 %v1133, 4294901760
    %v1135 = vsub.f32 %v1133, %v1134
    %v1136 = vand.u32 %v1135, 4294901760
    %1137 = vmatmul.f32.gmra.mxu0 %v1136
    %v1138 = vpop.f32.mrf.mxu0
    %v1139 = vadd.f32 0.0, %v1138
    %v1140 = vand.u32 %v1083, 4294901760
    %v1141 = vsub.f32 %v1083, %v1140
    %v1142 = vand.u32 %v1141, 4294901760
    %v1143 = vsub.f32 %v1141, %v1142
    %v1144 = vand.u32 %v1143, 4294901760
    %1145 = vmatmul.f32.gmra.mxu0 %v1144
    %v1146 = vpop.f32.mrf.mxu0
    %v1147 = vadd.f32 0.0, %v1146
    %1148 = vdwg.mxu0
    %v1149 = vand.u32 %v75, 4294901760
    %v1150 = vsub.f32 %v75, %v1149
    %v1151 = vand.u32 %v1150, 4294901760
    %v1152 = vsub.f32 %v1150, %v1151
    %v1153 = vand.u32 %v1152, 4294901760
    %1154 = vmatpush.msra.mxu0 %v1153
    %v1155 = vand.u32 %v74, 4294901760
    %v1156 = vsub.f32 %v74, %v1155
    %v1157 = vand.u32 %v1156, 4294901760
    %v1158 = vsub.f32 %v1156, %v1157
    %v1159 = vand.u32 %v1158, 4294901760
    %1160 = vmatpush.msra.mxu0 %v1159
    %v1161 = vand.u32 %v73, 4294901760
    %v1162 = vsub.f32 %v73, %v1161
    %v1163 = vand.u32 %v1162, 4294901760
    %v1164 = vsub.f32 %v1162, %v1163
    %v1165 = vand.u32 %v1164, 4294901760
    %1166 = vmatpush.msra.mxu0 %v1165
    %v1167 = vand.u32 %v72, 4294901760
    %v1168 = vsub.f32 %v72, %v1167
    %v1169 = vand.u32 %v1168, 4294901760
    %v1170 = vsub.f32 %v1168, %v1169
    %v1171 = vand.u32 %v1170, 4294901760
    %1172 = vmatpush.msra.mxu0 %v1171
    %v1173 = vand.u32 %v71, 4294901760
    %v1174 = vsub.f32 %v71, %v1173
    %v1175 = vand.u32 %v1174, 4294901760
    %v1176 = vsub.f32 %v1174, %v1175
    %v1177 = vand.u32 %v1176, 4294901760
    %1178 = vmatpush.msra.mxu0 %v1177
    %v1179 = vand.u32 %v70, 4294901760
    %v1180 = vsub.f32 %v70, %v1179
    %v1181 = vand.u32 %v1180, 4294901760
    %v1182 = vsub.f32 %v1180, %v1181
    %v1183 = vand.u32 %v1182, 4294901760
    %1184 = vmatpush.msra.mxu0 %v1183
    %v1185 = vand.u32 %v69, 4294901760
    %v1186 = vsub.f32 %v69, %v1185
    %v1187 = vand.u32 %v1186, 4294901760
    %v1188 = vsub.f32 %v1186, %v1187
    %v1189 = vand.u32 %v1188, 4294901760
    %1190 = vmatpush.msra.mxu0 %v1189
    %v1191 = vand.u32 %v68, 4294901760
    %v1192 = vsub.f32 %v68, %v1191
    %v1193 = vand.u32 %v1192, 4294901760
    %v1194 = vsub.f32 %v1192, %v1193
    %v1195 = vand.u32 %v1194, 4294901760
    %1196 = vmatpush.msra.mxu0 %v1195
    %v1197 = vand.u32 %v67, 4294901760
    %v1198 = vsub.f32 %v67, %v1197
    %v1199 = vand.u32 %v1198, 4294901760
    %v1200 = vsub.f32 %v1198, %v1199
    %v1201 = vand.u32 %v1200, 4294901760
    %1202 = vmatpush.msra.mxu0 %v1201
    %v1203 = vand.u32 %v66, 4294901760
    %v1204 = vsub.f32 %v66, %v1203
    %v1205 = vand.u32 %v1204, 4294901760
    %v1206 = vsub.f32 %v1204, %v1205
    %v1207 = vand.u32 %v1206, 4294901760
    %1208 = vmatpush.msra.mxu0 %v1207
    %v1209 = vand.u32 %v65, 4294901760
    %v1210 = vsub.f32 %v65, %v1209
    %v1211 = vand.u32 %v1210, 4294901760
    %v1212 = vsub.f32 %v1210, %v1211
    %v1213 = vand.u32 %v1212, 4294901760
    %1214 = vmatpush.msra.mxu0 %v1213
    %v1215 = vand.u32 %v64, 4294901760
    %v1216 = vsub.f32 %v64, %v1215
    %v1217 = vand.u32 %v1216, 4294901760
    %v1218 = vsub.f32 %v1216, %v1217
    %v1219 = vand.u32 %v1218, 4294901760
    %1220 = vmatpush.msra.mxu0 %v1219
    %v1221 = vand.u32 %v63, 4294901760
    %v1222 = vsub.f32 %v63, %v1221
    %v1223 = vand.u32 %v1222, 4294901760
    %v1224 = vsub.f32 %v1222, %v1223
    %v1225 = vand.u32 %v1224, 4294901760
    %1226 = vmatpush.msra.mxu0 %v1225
    %v1227 = vand.u32 %v62, 4294901760
    %v1228 = vsub.f32 %v62, %v1227
    %v1229 = vand.u32 %v1228, 4294901760
    %v1230 = vsub.f32 %v1228, %v1229
    %v1231 = vand.u32 %v1230, 4294901760
    %1232 = vmatpush.msra.mxu0 %v1231
    %v1233 = vand.u32 %v61, 4294901760
    %v1234 = vsub.f32 %v61, %v1233
    %v1235 = vand.u32 %v1234, 4294901760
    %v1236 = vsub.f32 %v1234, %v1235
    %v1237 = vand.u32 %v1236, 4294901760
    %1238 = vmatpush.msra.mxu0 %v1237
    %v1239 = vand.u32 %v60, 4294901760
    %v1240 = vsub.f32 %v60, %v1239
    %v1241 = vand.u32 %v1240, 4294901760
    %v1242 = vsub.f32 %v1240, %v1241
    %v1243 = vand.u32 %v1242, 4294901760
    %1244 = vmatpush.msra.mxu0 %v1243
    %v1245 = vand.u32 %v1080, 4294901760
    %1246 = vmatmul.f32.gmra.mxu0 %v1245
    %v1247 = vpop.f32.mrf.mxu0
    %v1248 = vadd.f32 %v1123, %v1247
    %v1249 = vand.u32 %v1081, 4294901760
    %1250 = vmatmul.f32.gmra.mxu0 %v1249
    %v1251 = vpop.f32.mrf.mxu0
    %v1252 = vadd.f32 %v1131, %v1251
    %v1253 = vand.u32 %v1082, 4294901760
    %1254 = vmatmul.f32.gmra.mxu0 %v1253
    %v1255 = vpop.f32.mrf.mxu0
    %v1256 = vadd.f32 %v1139, %v1255
    %v1257 = vand.u32 %v1083, 4294901760
    %1258 = vmatmul.f32.gmra.mxu0 %v1257
    %v1259 = vpop.f32.mrf.mxu0
    %v1260 = vadd.f32 %v1147, %v1259
    %1261 = vdwg.mxu0
    %v1262 = vand.u32 %v75, 4294901760
    %v1263 = vsub.f32 %v75, %v1262
    %1264 = vmatpush.msra.mxu0 %v1263
    %v1265 = vand.u32 %v74, 4294901760
    %v1266 = vsub.f32 %v74, %v1265
    %1267 = vmatpush.msra.mxu0 %v1266
    %v1268 = vand.u32 %v73, 4294901760
    %v1269 = vsub.f32 %v73, %v1268
    %1270 = vmatpush.msra.mxu0 %v1269
    %v1271 = vand.u32 %v72, 4294901760
    %v1272 = vsub.f32 %v72, %v1271
    %1273 = vmatpush.msra.mxu0 %v1272
    %v1274 = vand.u32 %v71, 4294901760
    %v1275 = vsub.f32 %v71, %v1274
    %1276 = vmatpush.msra.mxu0 %v1275
    %v1277 = vand.u32 %v70, 4294901760
    %v1278 = vsub.f32 %v70, %v1277
    %1279 = vmatpush.msra.mxu0 %v1278
    %v1280 = vand.u32 %v69, 4294901760
    %v1281 = vsub.f32 %v69, %v1280
    %1282 = vmatpush.msra.mxu0 %v1281
    %v1283 = vand.u32 %v68, 4294901760
    %v1284 = vsub.f32 %v68, %v1283
    %1285 = vmatpush.msra.mxu0 %v1284
    %v1286 = vand.u32 %v67, 4294901760
    %v1287 = vsub.f32 %v67, %v1286
    %1288 = vmatpush.msra.mxu0 %v1287
    %v1289 = vand.u32 %v66, 4294901760
    %v1290 = vsub.f32 %v66, %v1289
    %1291 = vmatpush.msra.mxu0 %v1290
    %v1292 = vand.u32 %v65, 4294901760
    %v1293 = vsub.f32 %v65, %v1292
    %1294 = vmatpush.msra.mxu0 %v1293
    %v1295 = vand.u32 %v64, 4294901760
    %v1296 = vsub.f32 %v64, %v1295
    %1297 = vmatpush.msra.mxu0 %v1296
    %v1298 = vand.u32 %v63, 4294901760
    %v1299 = vsub.f32 %v63, %v1298
    %1300 = vmatpush.msra.mxu0 %v1299
    %v1301 = vand.u32 %v62, 4294901760
    %v1302 = vsub.f32 %v62, %v1301
    %1303 = vmatpush.msra.mxu0 %v1302
    %v1304 = vand.u32 %v61, 4294901760
    %v1305 = vsub.f32 %v61, %v1304
    %1306 = vmatpush.msra.mxu0 %v1305
    %v1307 = vand.u32 %v60, 4294901760
    %v1308 = vsub.f32 %v60, %v1307
    %1309 = vmatpush.msra.mxu0 %v1308
    %v1310 = vand.u32 %v1080, 4294901760
    %v1311 = vsub.f32 %v1080, %v1310
    %1312 = vmatmul.f32.gmra.mxu0 %v1311
    %v1313 = vpop.f32.mrf.mxu0
    %v1314 = vadd.f32 %v1248, %v1313
    %v1315 = vand.u32 %v1081, 4294901760
    %v1316 = vsub.f32 %v1081, %v1315
    %1317 = vmatmul.f32.gmra.mxu0 %v1316
    %v1318 = vpop.f32.mrf.mxu0
    %v1319 = vadd.f32 %v1252, %v1318
    %v1320 = vand.u32 %v1082, 4294901760
    %v1321 = vsub.f32 %v1082, %v1320
    %1322 = vmatmul.f32.gmra.mxu0 %v1321
    %v1323 = vpop.f32.mrf.mxu0
    %v1324 = vadd.f32 %v1256, %v1323
    %v1325 = vand.u32 %v1083, 4294901760
    %v1326 = vsub.f32 %v1083, %v1325
    %1327 = vmatmul.f32.gmra.mxu0 %v1326
    %v1328 = vpop.f32.mrf.mxu0
    %v1329 = vadd.f32 %v1260, %v1328
    %1330 = vdwg.mxu0
    %v1331 = vand.u32 %v75, 4294901760
    %1332 = vmatpush.msra.mxu0 %v1331
    %v1333 = vand.u32 %v74, 4294901760
    %1334 = vmatpush.msra.mxu0 %v1333
    %v1335 = vand.u32 %v73, 4294901760
    %1336 = vmatpush.msra.mxu0 %v1335
    %v1337 = vand.u32 %v72, 4294901760
    %1338 = vmatpush.msra.mxu0 %v1337
    %v1339 = vand.u32 %v71, 4294901760
    %1340 = vmatpush.msra.mxu0 %v1339
    %v1341 = vand.u32 %v70, 4294901760
    %1342 = vmatpush.msra.mxu0 %v1341
    %v1343 = vand.u32 %v69, 4294901760
    %1344 = vmatpush.msra.mxu0 %v1343
    %v1345 = vand.u32 %v68, 4294901760
    %1346 = vmatpush.msra.mxu0 %v1345
    %v1347 = vand.u32 %v67, 4294901760
    %1348 = vmatpush.msra.mxu0 %v1347
    %v1349 = vand.u32 %v66, 4294901760
    %1350 = vmatpush.msra.mxu0 %v1349
    %v1351 = vand.u32 %v65, 4294901760
    %1352 = vmatpush.msra.mxu0 %v1351
    %v1353 = vand.u32 %v64, 4294901760
    %1354 = vmatpush.msra.mxu0 %v1353
    %v1355 = vand.u32 %v63, 4294901760
    %1356 = vmatpush.msra.mxu0 %v1355
    %v1357 = vand.u32 %v62, 4294901760
    %1358 = vmatpush.msra.mxu0 %v1357
    %v1359 = vand.u32 %v61, 4294901760
    %1360 = vmatpush.msra.mxu0 %v1359
    %v1361 = vand.u32 %v60, 4294901760
    %1362 = vmatpush.msra.mxu0 %v1361
    %v1363 = vand.u32 %v1080, 4294901760
    %v1364 = vsub.f32 %v1080, %v1363
    %v1365 = vand.u32 %v1364, 4294901760
    %1366 = vmatmul.f32.gmra.mxu0 %v1365
    %v1367 = vpop.f32.mrf.mxu0
    %v1368 = vadd.f32 %v1314, %v1367
    %v1369 = vand.u32 %v1081, 4294901760
    %v1370 = vsub.f32 %v1081, %v1369
    %v1371 = vand.u32 %v1370, 4294901760
    %1372 = vmatmul.f32.gmra.mxu0 %v1371
    %v1373 = vpop.f32.mrf.mxu0
    %v1374 = vadd.f32 %v1319, %v1373
    %v1375 = vand.u32 %v1082, 4294901760
    %v1376 = vsub.f32 %v1082, %v1375
    %v1377 = vand.u32 %v1376, 4294901760
    %1378 = vmatmul.f32.gmra.mxu0 %v1377
    %v1379 = vpop.f32.mrf.mxu0
    %v1380 = vadd.f32 %v1324, %v1379
    %v1381 = vand.u32 %v1083, 4294901760
    %v1382 = vsub.f32 %v1083, %v1381
    %v1383 = vand.u32 %v1382, 4294901760
    %1384 = vmatmul.f32.gmra.mxu0 %v1383
    %v1385 = vpop.f32.mrf.mxu0
    %v1386 = vadd.f32 %v1329, %v1385
    %1387 = vdwg.mxu0
    %v1388 = vand.u32 %v75, 4294901760
    %v1389 = vsub.f32 %v75, %v1388
    %v1390 = vand.u32 %v1389, 4294901760
    %1391 = vmatpush.msra.mxu0 %v1390
    %v1392 = vand.u32 %v74, 4294901760
    %v1393 = vsub.f32 %v74, %v1392
    %v1394 = vand.u32 %v1393, 4294901760
    %1395 = vmatpush.msra.mxu0 %v1394
    %v1396 = vand.u32 %v73, 4294901760
    %v1397 = vsub.f32 %v73, %v1396
    %v1398 = vand.u32 %v1397, 4294901760
    %1399 = vmatpush.msra.mxu0 %v1398
    %v1400 = vand.u32 %v72, 4294901760
    %v1401 = vsub.f32 %v72, %v1400
    %v1402 = vand.u32 %v1401, 4294901760
    %1403 = vmatpush.msra.mxu0 %v1402
    %v1404 = vand.u32 %v71, 4294901760
    %v1405 = vsub.f32 %v71, %v1404
    %v1406 = vand.u32 %v1405, 4294901760
    %1407 = vmatpush.msra.mxu0 %v1406
    %v1408 = vand.u32 %v70, 4294901760
    %v1409 = vsub.f32 %v70, %v1408
    %v1410 = vand.u32 %v1409, 4294901760
    %1411 = vmatpush.msra.mxu0 %v1410
    %v1412 = vand.u32 %v69, 4294901760
    %v1413 = vsub.f32 %v69, %v1412
    %v1414 = vand.u32 %v1413, 4294901760
    %1415 = vmatpush.msra.mxu0 %v1414
    %v1416 = vand.u32 %v68, 4294901760
    %v1417 = vsub.f32 %v68, %v1416
    %v1418 = vand.u32 %v1417, 4294901760
    %1419 = vmatpush.msra.mxu0 %v1418
    %v1420 = vand.u32 %v67, 4294901760
    %v1421 = vsub.f32 %v67, %v1420
    %v1422 = vand.u32 %v1421, 4294901760
    %1423 = vmatpush.msra.mxu0 %v1422
    %v1424 = vand.u32 %v66, 4294901760
    %v1425 = vsub.f32 %v66, %v1424
    %v1426 = vand.u32 %v1425, 4294901760
    %1427 = vmatpush.msra.mxu0 %v1426
    %v1428 = vand.u32 %v65, 4294901760
    %v1429 = vsub.f32 %v65, %v1428
    %v1430 = vand.u32 %v1429, 4294901760
    %1431 = vmatpush.msra.mxu0 %v1430
    %v1432 = vand.u32 %v64, 4294901760
    %v1433 = vsub.f32 %v64, %v1432
    %v1434 = vand.u32 %v1433, 4294901760
    %1435 = vmatpush.msra.mxu0 %v1434
    %v1436 = vand.u32 %v63, 4294901760
    %v1437 = vsub.f32 %v63, %v1436
    %v1438 = vand.u32 %v1437, 4294901760
    %1439 = vmatpush.msra.mxu0 %v1438
    %v1440 = vand.u32 %v62, 4294901760
    %v1441 = vsub.f32 %v62, %v1440
    %v1442 = vand.u32 %v1441, 4294901760
    %1443 = vmatpush.msra.mxu0 %v1442
    %v1444 = vand.u32 %v61, 4294901760
    %v1445 = vsub.f32 %v61, %v1444
    %v1446 = vand.u32 %v1445, 4294901760
    %1447 = vmatpush.msra.mxu0 %v1446
    %v1448 = vand.u32 %v60, 4294901760
    %v1449 = vsub.f32 %v60, %v1448
    %v1450 = vand.u32 %v1449, 4294901760
    %1451 = vmatpush.msra.mxu0 %v1450
    %v1452 = vand.u32 %v1080, 4294901760
    %1453 = vmatmul.f32.gmra.mxu0 %v1452
    %v1454 = vpop.f32.mrf.mxu0
    %v1455 = vadd.f32 %v1368, %v1454
    %v1456 = vand.u32 %v1081, 4294901760
    %1457 = vmatmul.f32.gmra.mxu0 %v1456
    %v1458 = vpop.f32.mrf.mxu0
    %v1459 = vadd.f32 %v1374, %v1458
    %v1460 = vand.u32 %v1082, 4294901760
    %1461 = vmatmul.f32.gmra.mxu0 %v1460
    %v1462 = vpop.f32.mrf.mxu0
    %v1463 = vadd.f32 %v1380, %v1462
    %v1464 = vand.u32 %v1083, 4294901760
    %1465 = vmatmul.f32.gmra.mxu0 %v1464
    %v1466 = vpop.f32.mrf.mxu0
    %v1467 = vadd.f32 %v1386, %v1466
    %1468 = vdwg.mxu0
    %v1469 = vand.u32 %v75, 4294901760
    %1470 = vmatpush.msra.mxu0 %v1469
    %v1471 = vand.u32 %v74, 4294901760
    %1472 = vmatpush.msra.mxu0 %v1471
    %v1473 = vand.u32 %v73, 4294901760
    %1474 = vmatpush.msra.mxu0 %v1473
    %v1475 = vand.u32 %v72, 4294901760
    %1476 = vmatpush.msra.mxu0 %v1475
    %v1477 = vand.u32 %v71, 4294901760
    %1478 = vmatpush.msra.mxu0 %v1477
    %v1479 = vand.u32 %v70, 4294901760
    %1480 = vmatpush.msra.mxu0 %v1479
    %v1481 = vand.u32 %v69, 4294901760
    %1482 = vmatpush.msra.mxu0 %v1481
    %v1483 = vand.u32 %v68, 4294901760
    %1484 = vmatpush.msra.mxu0 %v1483
    %v1485 = vand.u32 %v67, 4294901760
    %1486 = vmatpush.msra.mxu0 %v1485
    %v1487 = vand.u32 %v66, 4294901760
    %1488 = vmatpush.msra.mxu0 %v1487
    %v1489 = vand.u32 %v65, 4294901760
    %1490 = vmatpush.msra.mxu0 %v1489
    %v1491 = vand.u32 %v64, 4294901760
    %1492 = vmatpush.msra.mxu0 %v1491
    %v1493 = vand.u32 %v63, 4294901760
    %1494 = vmatpush.msra.mxu0 %v1493
    %v1495 = vand.u32 %v62, 4294901760
    %1496 = vmatpush.msra.mxu0 %v1495
    %v1497 = vand.u32 %v61, 4294901760
    %1498 = vmatpush.msra.mxu0 %v1497
    %v1499 = vand.u32 %v60, 4294901760
    %1500 = vmatpush.msra.mxu0 %v1499
    %v1501 = vand.u32 %v1080, 4294901760
    %1502 = vmatmul.f32.gmra.mxu0 %v1501
    %v1503 = vpop.f32.mrf.mxu0
    %v1504 = vadd.f32 %v1455, %v1503
    %v1505 = vand.u32 %v1081, 4294901760
    %1506 = vmatmul.f32.gmra.mxu0 %v1505
    %v1507 = vpop.f32.mrf.mxu0
    %v1508 = vadd.f32 %v1459, %v1507
    %v1509 = vand.u32 %v1082, 4294901760
    %1510 = vmatmul.f32.gmra.mxu0 %v1509
    %v1511 = vpop.f32.mrf.mxu0
    %v1512 = vadd.f32 %v1463, %v1511
    %v1513 = vand.u32 %v1083, 4294901760
    %1514 = vmatmul.f32.gmra.mxu0 %v1513
    %v1515 = vpop.f32.mrf.mxu0
    %v1516 = vadd.f32 %v1467, %v1515
    %1517 = vdwg.mxu0
    %v1518 = vmax.f32 %v1504, 1e-30
    %v1519 = vmax.f32 %v1508, 1e-30
    %v1520 = vmax.f32 %v1512, 1e-30
    %v1521 = vmax.f32 %v1516, 1e-30
    %v1522 = vrsqrt.pop %v1518
    %v1523 = vmul.f32 %v1522, %v1518
    %v1524 = vmul.f32 %v1523, %v1522
    %v1525 = vmul.f32 0.5, %v1524
    %v1526 = vsub.f32 1.5, %v1525
    %v1527 = vmul.f32 %v1522, %v1526
    %v1528 = vmul.f32 %v1518, %v1527
    %vm1529 = vcmp.eq.f32.partialorder %v1518, inf
    %v1530 = vsel %vm1529, %v1518, %v1528
    %vm1531 = vcmp.eq.f32.partialorder %v1518, 0.0
    %v1532 = vand.u32 %v1518, 2147483648
    %v1533 = vsel %vm1531, %v1532, %v1530
    %v1534 = vrsqrt.pop %v1519
    %v1535 = vmul.f32 %v1534, %v1519
    %v1536 = vmul.f32 %v1535, %v1534
    %v1537 = vmul.f32 0.5, %v1536
    %v1538 = vsub.f32 1.5, %v1537
    %v1539 = vmul.f32 %v1534, %v1538
    %v1540 = vmul.f32 %v1519, %v1539
    %vm1541 = vcmp.eq.f32.partialorder %v1519, inf
    %v1542 = vsel %vm1541, %v1519, %v1540
    %vm1543 = vcmp.eq.f32.partialorder %v1519, 0.0
    %v1544 = vand.u32 %v1519, 2147483648
    %v1545 = vsel %vm1543, %v1544, %v1542
    %v1546 = vrsqrt.pop %v1520
    %v1547 = vmul.f32 %v1546, %v1520
    %v1548 = vmul.f32 %v1547, %v1546
    %v1549 = vmul.f32 0.5, %v1548
    %v1550 = vsub.f32 1.5, %v1549
    %v1551 = vmul.f32 %v1546, %v1550
    %v1552 = vmul.f32 %v1520, %v1551
    %vm1553 = vcmp.eq.f32.partialorder %v1520, inf
    %v1554 = vsel %vm1553, %v1520, %v1552
    %vm1555 = vcmp.eq.f32.partialorder %v1520, 0.0
    %v1556 = vand.u32 %v1520, 2147483648
    %v1557 = vsel %vm1555, %v1556, %v1554
    %v1558 = vrsqrt.pop %v1521
    %v1559 = vmul.f32 %v1558, %v1521
    %v1560 = vmul.f32 %v1559, %v1558
    %v1561 = vmul.f32 0.5, %v1560
    %v1562 = vsub.f32 1.5, %v1561
    %v1563 = vmul.f32 %v1558, %v1562
    %v1564 = vmul.f32 %v1521, %v1563
    %vm1565 = vcmp.eq.f32.partialorder %v1521, inf
    %v1566 = vsel %vm1565, %v1521, %v1564
    %vm1567 = vcmp.eq.f32.partialorder %v1521, 0.0
    %v1568 = vand.u32 %v1521, 2147483648
    %v1569 = vsel %vm1567, %v1568, %v1566
    %v1570 = vrsqrt.pop %v1518
    %v1571 = vmul.f32 %v1570, %v1518
    %v1572 = vmul.f32 %v1571, %v1570
    %v1573 = vmul.f32 0.5, %v1572
    %v1574 = vsub.f32 1.5, %v1573
    %v1575 = vmul.f32 %v1570, %v1574
    %vm1576 = vweird.f32 %v1518
    %vm1577 = vweird.f32 %v1570
    %vm1578 = vmor %vm1576, %vm1577
    %v1579 = vsel %vm1578, %v1570, %v1575
    %v1580 = vrsqrt.pop %v1519
    %v1581 = vmul.f32 %v1580, %v1519
    %v1582 = vmul.f32 %v1581, %v1580
    %v1583 = vmul.f32 0.5, %v1582
    %v1584 = vsub.f32 1.5, %v1583
    %v1585 = vmul.f32 %v1580, %v1584
    %vm1586 = vweird.f32 %v1519
    %vm1587 = vweird.f32 %v1580
    %vm1588 = vmor %vm1586, %vm1587
    %v1589 = vsel %vm1588, %v1580, %v1585
    %v1590 = vrsqrt.pop %v1520
    %v1591 = vmul.f32 %v1590, %v1520
    %v1592 = vmul.f32 %v1591, %v1590
    %v1593 = vmul.f32 0.5, %v1592
    %v1594 = vsub.f32 1.5, %v1593
    %v1595 = vmul.f32 %v1590, %v1594
    %vm1596 = vweird.f32 %v1520
    %vm1597 = vweird.f32 %v1590
    %vm1598 = vmor %vm1596, %vm1597
    %v1599 = vsel %vm1598, %v1590, %v1595
    %v1600 = vrsqrt.pop %v1521
    %v1601 = vmul.f32 %v1600, %v1521
    %v1602 = vmul.f32 %v1601, %v1600
    %v1603 = vmul.f32 0.5, %v1602
    %v1604 = vsub.f32 1.5, %v1603
    %v1605 = vmul.f32 %v1600, %v1604
    %vm1606 = vweird.f32 %v1521
    %vm1607 = vweird.f32 %v1600
    %vm1608 = vmor %vm1606, %vm1607
    %v1609 = vsel %vm1608, %v1600, %v1605
    %v1610 = vmul.f32 %v1533, 1.4142135
    %v1611 = vmul.f32 %v1545, 1.4142135
    %v1612 = vmul.f32 %v1557, 1.4142135
    %v1613 = vmul.f32 %v1569, 1.4142135
    %v1614 = vmin.f32 %v1610, 15.0
    %v1615 = vmin.f32 %v1611, 15.0
    %v1616 = vmin.f32 %v1612, 15.0
    %v1617 = vmin.f32 %v1613, 15.0
    %v1618 = vmul.f32 %v1614, 1.442695
    %v1619 = vpow.pop %v1618
    %v1620 = vmul.f32 %v1615, 1.442695
    %v1621 = vpow.pop %v1620
    %v1622 = vmul.f32 %v1616, 1.442695
    %v1623 = vpow.pop %v1622
    %v1624 = vmul.f32 %v1617, 1.442695
    %v1625 = vpow.pop %v1624
    %v1626 = vrcp.pop %v1619
    %v1627 = vmul.f32 %v1619, %v1626
    %v1628 = vsub.f32 1.0, %v1627
    %v1629 = vmul.f32 %v1626, %v1628
    %v1630 = vadd.f32 %v1626, %v1629
    %vm1631 = vweird.f32 %v1619
    %vm1632 = vweird.f32 %v1626
    %vm1633 = vmor %vm1631, %vm1632
    %v1634 = vsel %vm1633, %v1626, %v1630
    %v1635 = vand.u32 2147483647, %v1619
    %vm1636 = vcmp.eq.f32.partialorder %v1635, 8.507059e+37
    %v1637 = vand.u32 %v1619, 2147483648
    %v1638 = vor.u32 1.1754944e-38, %v1637
    %v1639 = vsel %vm1636, %v1638, %v1634
    %v1640 = vmul.f32 1.0, %v1639
    %v1641 = vrcp.pop %v1621
    %v1642 = vmul.f32 %v1621, %v1641
    %v1643 = vsub.f32 1.0, %v1642
    %v1644 = vmul.f32 %v1641, %v1643
    %v1645 = vadd.f32 %v1641, %v1644
    %vm1646 = vweird.f32 %v1621
    %vm1647 = vweird.f32 %v1641
    %vm1648 = vmor %vm1646, %vm1647
    %v1649 = vsel %vm1648, %v1641, %v1645
    %v1650 = vand.u32 2147483647, %v1621
    %vm1651 = vcmp.eq.f32.partialorder %v1650, 8.507059e+37
    %v1652 = vand.u32 %v1621, 2147483648
    %v1653 = vor.u32 1.1754944e-38, %v1652
    %v1654 = vsel %vm1651, %v1653, %v1649
    %v1655 = vmul.f32 1.0, %v1654
    %v1656 = vrcp.pop %v1623
    %v1657 = vmul.f32 %v1623, %v1656
    %v1658 = vsub.f32 1.0, %v1657
    %v1659 = vmul.f32 %v1656, %v1658
    %v1660 = vadd.f32 %v1656, %v1659
    %vm1661 = vweird.f32 %v1623
    %vm1662 = vweird.f32 %v1656
    %vm1663 = vmor %vm1661, %vm1662
    %v1664 = vsel %vm1663, %v1656, %v1660
    %v1665 = vand.u32 2147483647, %v1623
    %vm1666 = vcmp.eq.f32.partialorder %v1665, 8.507059e+37
    %v1667 = vand.u32 %v1623, 2147483648
    %v1668 = vor.u32 1.1754944e-38, %v1667
    %v1669 = vsel %vm1666, %v1668, %v1664
    %v1670 = vmul.f32 1.0, %v1669
    %v1671 = vrcp.pop %v1625
    %v1672 = vmul.f32 %v1625, %v1671
    %v1673 = vsub.f32 1.0, %v1672
    %v1674 = vmul.f32 %v1671, %v1673
    %v1675 = vadd.f32 %v1671, %v1674
    %vm1676 = vweird.f32 %v1625
    %vm1677 = vweird.f32 %v1671
    %vm1678 = vmor %vm1676, %vm1677
    %v1679 = vsel %vm1678, %v1671, %v1675
    %v1680 = vand.u32 2147483647, %v1625
    %vm1681 = vcmp.eq.f32.partialorder %v1680, 8.507059e+37
    %v1682 = vand.u32 %v1625, 2147483648
    %v1683 = vor.u32 1.1754944e-38, %v1682
    %v1684 = vsel %vm1681, %v1683, %v1679
    %v1685 = vmul.f32 1.0, %v1684
    %v1686 = vsub.f32 %v1619, %v1640
    %v1687 = vsub.f32 %v1621, %v1655
    %v1688 = vsub.f32 %v1623, %v1670
    %v1689 = vsub.f32 %v1625, %v1685
    %v1690 = vmul.f32 %v1686, 0.5
    %v1691 = vmul.f32 %v1687, 0.5
    %v1692 = vmul.f32 %v1688, 0.5
    %v1693 = vmul.f32 %v1689, 0.5
    %v1694 = vadd.f32 %v1619, %v1640
    %v1695 = vadd.f32 %v1621, %v1655
    %v1696 = vadd.f32 %v1623, %v1670
    %v1697 = vadd.f32 %v1625, %v1685
    %v1698 = vmul.f32 %v1694, 0.5
    %v1699 = vmul.f32 %v1695, 0.5
    %v1700 = vmul.f32 %v1696, 0.5
    %v1701 = vmul.f32 %v1697, 0.5
    %v1702 = vmul.f32 %v1698, 0.70710677
    %v1703 = vmul.f32 %v1699, 0.70710677
    %v1704 = vmul.f32 %v1700, 0.70710677
    %v1705 = vmul.f32 %v1701, 0.70710677
    %v1706 = vmul.f32 %v1690, 0.70710677
    %v1707 = vmul.f32 %v1691, 0.70710677
    %v1708 = vmul.f32 %v1692, 0.70710677
    %v1709 = vmul.f32 %v1693, 0.70710677
    %v1710 = vmul.f32 %v1706, %v1579
    %v1711 = vmul.f32 %v1707, %v1589
    %v1712 = vmul.f32 %v1708, %v1599
    %v1713 = vmul.f32 %v1709, %v1609
    %v1714 = vmul.f32 %v1710, %v1076
    %v1715 = vmul.f32 %v1711, %v1077
    %v1716 = vmul.f32 %v1712, %v1078
    %v1717 = vmul.f32 %v1713, %v1079
    %v1718 = vsel %vm51, %v1702, %v1714
    %v1719 = vsel %vm51, %v1703, %v1715
    %v1720 = vsel %vm51, %v1704, %v1716
    %v1721 = vsel %vm51, %v1705, %v1717
    %1722 = vst [vmem:[#allocation7] sm:$0xff] %v1718
    %1723 = vst [vmem:[#allocation7 + $0x8] sm:$0xff] %v1719
    %1724 = vst [vmem:[#allocation7 + $0x10] sm:$0xff] %v1720
    %1725 = vst [vmem:[#allocation7 + $0x18] sm:$0xff] %v1721
    // Predicated region
    $region18: #{tpu_custom_call.1} parent=1 // pred_check
      _
    $region19: #{tpu_custom_call.1} parent=1 // pred_check_branch
      %1727 = sbr.rel (0) target = $region21
    $region20: #{tpu_custom_call.1} parent=1 // pred_region
      %1729 = vsyncadd [#allocation4], 0
      %s1730 = sshll.u32 [#allocation7], 4
      %s1731 = int_to_ptr.vmem [resolvable:$true] %s1730
      %s1732 = sshll.u32 %s2, 4
      %s1733 = int_to_ptr.hbm [resolvable:$true] %s1732
      %1738 = dma.vmem_to_hbm [thread:$0]  %s1731, 512, %s1733, [#allocation4], 128, 128, 8
    $region21: #{tpu_custom_call.1} parent=1 // pred_fallthru
      _
    // Predicated region
    $region22: #{tpu_custom_call.1} parent=1 // pred_check
      _
    $region23: #{tpu_custom_call.1} parent=1 // pred_check_branch
      %1740 = sbr.rel (0) target = $region25
    $region24: #{tpu_custom_call.1} parent=1 // pred_region
      %1742 = dma.done [#allocation4], 512
    $region25: #{tpu_custom_call.1} parent=1 // pred_fallthru
      _
    %1743 = vsyncpa [#allocation3], 1
    %1744 = vsyncpa [#allocation6], 1
    %1745 = vsyncpa [#allocation4], 1

</llo_original>
